<compile_context>
chip_gen: v5e
topology: v5e:2x2
jax: 0.10.0
libtpu: 0.0.40
codegen_flags: <defaults>
</compile_context>

<pallas_src>
import jax
import jax.numpy as jnp
from jax import lax
from jax.experimental import pallas as pl
from jax.experimental.pallas import tpu as pltpu

EPS = 1e-5


# ---------------------------------------------------------------------------
# Fused Pallas kernel: both ResidualBlocks for one image, wide (rows, W*C)
# layout.  3x3 convs are three banded MXU matmuls (horizontal padding folded
# into the band structure); BN scale is pre-folded into the weights.
# ---------------------------------------------------------------------------
def decoder_fused_kernel(x_ref, w1_ref, wc_ref, b_ref, out_ref,
                         pad_in, pad_mid):
    # x_ref  : (1, H, WCi)  f32   unpadded block-1 input, width*chan flattened
    # w1_ref : (WCi, 4*WCo) bf16  block1 conv1 banded rows [A0 | A1 | SC | A2]
    #                             (A1 and the 1x1 shortcut share the centre band)
    # wc_ref : (WCo, 10*WCo) bf16 [blk1 conv2 A0|A1|A2 |
    #                              blk2 conv1 A0|A1|SC|A2 | blk2 conv2 A0|A1|A2]
    # b_ref  : (6, WCo) f32       fused BN biases
    #                             [b1.bn1, b1.sc, b1.bn2, b2.bn1, b2.sc, b2.bn2]
    # out_ref: (1, H, WCo)  f32   lane-dense output
    # pad_in : (H+2, WCi) f32 scratch (row-padded block-1 input)
    # pad_mid: (H+2, WCo) f32 scratch (reused: blk1 y1, blk1 out, blk2 y1)
    H = out_ref.shape[1]
    WCo = out_ref.shape[2]
    WCi = x_ref.shape[2]

    # ---- row padding done in-kernel (only pad rows are zeroed) -------------
    pad_in[0:1, :] = jnp.zeros((1, WCi), jnp.float32)
    pad_in[H + 1:H + 2, :] = jnp.zeros((1, WCi), jnp.float32)
    pad_in[1:H + 1, :] = x_ref[0]
    pad_mid[0:1, :] = jnp.zeros((1, WCo), jnp.float32)
    pad_mid[H + 1:H + 2, :] = jnp.zeros((1, WCo), jnp.float32)

    def residual_block(src_ref, wa_ref, a_off, wb_ref, b_off,
                       bias1, bias_sc, bias2):
        # Load the three row-bands of the padded input (values, so the later
        # overwrite of pad_mid is safe even when src_ref is pad_mid itself).
        band0 = src_ref[0:H, :].astype(jnp.bfloat16)
        band1 = src_ref[1:H + 1, :].astype(jnp.bfloat16)
        band2 = src_ref[2:H + 2, :].astype(jnp.bfloat16)

        # conv1 rows 0 / 2, plus centre row fused with the 1x1 shortcut
        # (single N = 2*WCo = 256 matmul -> fills the 256-wide MXU).
        acc = jnp.dot(band0, wa_ref[:, a_off:a_off + WCo],
                      preferred_element_type=jnp.float32)
        mid = jnp.dot(band1, wa_ref[:, a_off + WCo:a_off + 3 * WCo],
                      preferred_element_type=jnp.float32)
        acc = acc + jnp.dot(band2, wa_ref[:, a_off + 3 * WCo:a_off + 4 * WCo],
                            preferred_element_type=jnp.float32)
        ysc = mid[:, WCo:2 * WCo] + bias_sc                       # shortcut
        y1 = jnp.maximum(acc + mid[:, 0:WCo] + bias1, 0.0)        # conv1+BN+ReLU

        # conv2: row-pad y1 into the shared scratch (pad rows stay zero).
        pad_mid[1:H + 1, :] = y1
        acc2 = jnp.dot(pad_mid[0:H, :].astype(jnp.bfloat16),
                       wb_ref[:, b_off:b_off + WCo],
                       preferred_element_type=jnp.float32)
        acc2 = acc2 + jnp.dot(pad_mid[1:H + 1, :].astype(jnp.bfloat16),
                              wb_ref[:, b_off + WCo:b_off + 2 * WCo],
                              preferred_element_type=jnp.float32)
        acc2 = acc2 + jnp.dot(pad_mid[2:H + 2, :].astype(jnp.bfloat16),
                              wb_ref[:, b_off + 2 * WCo:b_off + 3 * WCo],
                              preferred_element_type=jnp.float32)
        return jnp.maximum(acc2 + bias2 + ysc, 0.0)

    # ---- residual block 1 ---------------------------------------------------
    out1 = residual_block(pad_in, w1_ref, 0, wc_ref, 0,
                          b_ref[0:1, :], b_ref[1:2, :], b_ref[2:3, :])
    # block-2 input: row-pad block-1 output into the shared scratch
    pad_mid[1:H + 1, :] = out1
    # ---- residual block 2 ---------------------------------------------------
    out2 = residual_block(pad_mid, wc_ref, 3 * WCo, wc_ref, 7 * WCo,
                          b_ref[3:4, :], b_ref[4:5, :], b_ref[5:6, :])
    out_ref[0] = out2.astype(out_ref.dtype)


# ---------------------------------------------------------------------------
# Weight preparation (run ONCE, outside the per-forward jit).
# ---------------------------------------------------------------------------
def _band_matrix(w_row, W):
    """Banded matrix M of shape (W*Cin, W*Cout) so that (row-band @ M) computes
    one kernel row of a 3x3 conv (stride 1, pad 1) in the wide (rows, W*C)
    layout.  Horizontal zero padding is folded into the band structure."""
    kw, cin, cout = w_row.shape
    mat = jnp.zeros((W, cin, W, cout), jnp.float32)
    for dx in range(kw):
        w_lo = max(0, 1 - dx)
        w_hi = min(W, W + 1 - dx)
        ws_idx = jnp.arange(w_lo, w_hi)
        xs_idx = ws_idx + dx - 1
        upd = jnp.broadcast_to(w_row[dx][None, :, :], (w_hi - w_lo, cin, cout))
        mat = mat.at[xs_idx, :, ws_idx, :].set(upd)
    return mat.reshape(W * cin, W * cout)


def _prepare_residual(p, W):
    """Fold eval-mode BN into the conv weights (f32, pre-bf16-cast) and biases,
    and build the banded matrices.  Returns (wa, wb, biases):
      wa : (W*Cin, 4*W*Cout)  conv1 [A0 | A1 | SC | A2]
      wb : (W*Cout, 3*W*Cout) conv2 [A0 | A1 | A2]
      biases: (3, W*Cout)     [bn1 bias, shortcut bias, bn2 bias]
    """
    def scale_bias(conv_b, g, be, m, v):
        s = g / jnp.sqrt(v + EPS)
        return s, (conv_b - m) * s + be

    s1, b1 = scale_bias(p["b1"], p["g1"], p["be1"], p["m1"], p["v1"])
    s2, b2 = scale_bias(p["b2"], p["g2"], p["be2"], p["m2"], p["v2"])
    ss, bs = scale_bias(p["bs"], p["gs"], p["bes"], p["ms"], p["vs"])

    w1 = p["w1"] * s1          # BN scale folded into f32 weights pre-cast
    w2 = p["w2"] * s2
    ws = p["ws"] * ss

    a1 = [_band_matrix(w1[dy], W) for dy in range(3)]
    a2 = [_band_matrix(w2[dy], W) for dy in range(3)]
    sc = jnp.kron(jnp.eye(W, dtype=jnp.float32), ws[0, 0])

    wa = jnp.concatenate([a1[0], a1[1], sc, a1[2]], axis=1)
    wb = jnp.concatenate(a2, axis=1)
    biases = jnp.stack([jnp.tile(b1, W), jnp.tile(bs, W), jnp.tile(b2, W)])
    return wa, wb, biases


def prepare_decoder_params(params, W):
    wa1, wb1, bias1 = _prepare_residual(params["r1"], W)
    wa2, wb2, bias2 = _prepare_residual(params["r2"], W)
    return dict(
        w1=wa1.astype(jnp.bfloat16),                               # (W*Cin, 4*W*Co)
        wc=jnp.concatenate([wb1, wa2, wb2], axis=1).astype(jnp.bfloat16),
        biases=jnp.concatenate([bias1, bias2], axis=0).astype(jnp.float32),
    )


# ---------------------------------------------------------------------------
# Forward wrapper.
# ---------------------------------------------------------------------------
def _decoder_fused_call(x_wide, prep, *, H, W, Cout):
    N = x_wide.shape[0]
    WCi = x_wide.shape[2]
    WCo = W * Cout
    grid_spec = pltpu.PrefetchScalarGridSpec(
        num_scalar_prefetch=0,
        grid=(N,),
        in_specs=[
            pl.BlockSpec((1, H, WCi), lambda n: (n, 0, 0)),
            pl.BlockSpec((WCi, 4 * WCo), lambda n: (0, 0)),
            pl.BlockSpec((WCo, 10 * WCo), lambda n: (0, 0)),
            pl.BlockSpec((6, WCo), lambda n: (0, 0)),
        ],
        out_specs=pl.BlockSpec((1, H, WCo), lambda n: (n, 0, 0)),
        scratch_shapes=[pltpu.VMEM((H + 2, WCi), jnp.float32),
                        pltpu.VMEM((H + 2, WCo), jnp.float32)],
    )
    return pl.pallas_call(
        decoder_fused_kernel,
        out_shape=jax.ShapeDtypeStruct((N, H, WCo), jnp.float32),
        grid_spec=grid_spec,
        compiler_params=pltpu.CompilerParams(
            dimension_semantics=("parallel",)),
    )(x_wide, prep["w1"], prep["wc"], prep["biases"])


def _bilinear_matrix(n_in, n_out):
    # align_corners=True interpolation matrix (n_out, n_in)
    if n_in == 1:
        return jnp.ones((n_out, 1), jnp.float32)
    pos = jnp.arange(n_out, dtype=jnp.float32) * (n_in - 1) / (n_out - 1)
    lo = jnp.clip(jnp.floor(pos).astype(jnp.int32), 0, n_in - 2)
    frac = pos - lo.astype(jnp.float32)
    rows = jnp.arange(n_out)
    m = jnp.zeros((n_out, n_in), jnp.float32)
    m = m.at[rows, lo].add(1.0 - frac)
    m = m.at[rows, lo + 1].add(frac)
    return m


def bilinear_upsample_2x(x):
    N, H, W, C = x.shape
    mh = _bilinear_matrix(H, 2 * H)
    mw = _bilinear_matrix(W, 2 * W)
    x = jnp.einsum("ph,nhwc->npwc", mh, x)
    x = jnp.einsum("qw,npwc->npqc", mw, x)
    return x


def decoder_block(inputs_nhwc, skip_nhwc, prep):
    # upsample + channel concat in plain JAX (see TODO at top of file)
    x = bilinear_upsample_2x(inputs_nhwc)
    x = jnp.concatenate([x, skip_nhwc], axis=-1)
    N, H, W, C = x.shape
    Cout = prep["biases"].shape[1] // W
    x_wide = x.reshape(N, H, W * C)
    out = _decoder_fused_call(x_wide, prep, H=H, W=W, Cout=Cout)
    return out.reshape(N, H, W, Cout)


# ---------------------------------------------------------------------------
# Pure-JAX reference (same eval-mode BN semantics).
# ---------------------------------------------------------------------------
def _conv_ref(x, w, b):
    return lax.conv_general_dilated(
        x, w, (1, 1), "SAME",
        dimension_numbers=("NHWC", "HWIO", "NHWC")) + b


def _bn_ref(x, g, beta, m, v):
    return (x - m) / jnp.sqrt(v + EPS) * g + beta


def residual_block_ref(x, p):
    y = _conv_ref(x, p["w1"], p["b1"])
    y = jnp.maximum(_bn_ref(y, p["g1"], p["be1"], p["m1"], p["v1"]), 0.0)
    y = _conv_ref(y, p["w2"], p["b2"])
    y = _bn_ref(y, p["g2"], p["be2"], p["m2"], p["v2"])
    s = _conv_ref(x, p["ws"], p["bs"])
    s = _bn_ref(s, p["gs"], p["bes"], p["ms"], p["vs"])
    return jnp.maximum(y + s, 0.0)


def decoder_block_ref(inputs_nhwc, skip_nhwc, params):
    x = bilinear_upsample_2x(inputs_nhwc)
    x = jnp.concatenate([x, skip_nhwc], axis=-1)
    x = residual_block_ref(x, params["r1"])
    x = residual_block_ref(x, params["r2"])
    return x


# ---------------------------------------------------------------------------
# Parameters.
# ---------------------------------------------------------------------------
def make_rb_params(key, in_c, out_c):
    ks = jax.random.split(key, 18)
    f32 = jnp.float32
    return dict(
        w1=0.1 * jax.random.normal(ks[0], (3, 3, in_c, out_c), f32),
        b1=0.1 * jax.random.normal(ks[1], (out_c,), f32),
        g1=1.0 + 0.1 * jax.random.normal(ks[2], (out_c,), f32),
        be1=0.1 * jax.random.normal(ks[3], (out_c,), f32),
        m1=0.1 * jax.random.normal(ks[4], (out_c,), f32),
        v1=1.0 + 0.1 * jnp.abs(jax.random.normal(ks[5], (out_c,), f32)),
        w2=0.1 * jax.random.normal(ks[6], (3, 3, out_c, out_c), f32),
        b2=0.1 * jax.random.normal(ks[7], (out_c,), f32),
        g2=1.0 + 0.1 * jax.random.normal(ks[8], (out_c,), f32),
        be2=0.1 * jax.random.normal(ks[9], (out_c,), f32),
        m2=0.1 * jax.random.normal(ks[10], (out_c,), f32),
        v2=1.0 + 0.1 * jnp.abs(jax.random.normal(ks[11], (out_c,), f32)),
        ws=0.1 * jax.random.normal(ks[12], (1, 1, in_c, out_c), f32),
        bs=0.1 * jax.random.normal(ks[13], (out_c,), f32),
        gs=1.0 + 0.1 * jax.random.normal(ks[14], (out_c,), f32),
        bes=0.1 * jax.random.normal(ks[15], (out_c,), f32),
        ms=0.1 * jax.random.normal(ks[16], (out_c,), f32),
        vs=1.0 + 0.1 * jnp.abs(jax.random.normal(ks[17], (out_c,), f32)),
    )


if __name__ == "__main__":
    N = 2
    C_up, C_skip, C_out = 8, 4, 8      # DecoderBlock(in_c=(8, 4), out_c=8)
    Hs = Ws = 8                        # decoder input spatial -> 16x16 out

    key = jax.random.PRNGKey(0)
    k_in, k_skip, k1, k2 = jax.random.split(key, 4)
    inputs_nchw = jax.random.normal(k_in, (N, C_up, Hs, Ws), jnp.float32)
    skip_nchw = jax.random.normal(k_skip, (N, C_skip, 2 * Hs, 2 * Ws),
                                  jnp.float32)

    # PyTorch layout -> kernel layout (NHWC)
    inputs_nhwc = jnp.transpose(inputs_nchw, (0, 2, 3, 1))
    skip_nhwc = jnp.transpose(skip_nchw, (0, 2, 3, 1))

    params = {"r1": make_rb_params(k1, C_up + C_skip, C_out),
              "r2": make_rb_params(k2, C_out, C_out)}

    # Weight preparation hoisted out of the per-forward jit: run once, reuse.
    prep = jax.block_until_ready(prepare_decoder_params(params, 2 * Ws))

    fwd = jax.jit(decoder_block)
    out = jax.block_until_ready(fwd(inputs_nhwc, skip_nhwc, prep))

    ref = decoder_block_ref(inputs_nhwc, skip_nhwc, params)

    assert out.shape == (N, 2 * Hs, 2 * Ws, C_out)
    max_err = jnp.max(jnp.abs(out - ref))
    assert jnp.allclose(out, ref, atol=5e-2, rtol=5e-2), (
        f"mismatch, max abs err {max_err}")
    print("KERNEL_OK")
</pallas_src>

<mosaic_0001>
module attributes {stable_mosaic.version = 11 : i64} {
  func.func @decoder_fused_kernel(%arg0: i32, %arg1: memref<1x16x192xf32, #tpu.memory_space<vmem>>, %arg2: memref<192x512xbf16, #tpu.memory_space<vmem>>, %arg3: memref<128x1280xbf16, #tpu.memory_space<vmem>>, %arg4: memref<6x128xf32, #tpu.memory_space<vmem>>, %arg5: memref<1x16x128xf32, #tpu.memory_space<vmem>>, %arg6: memref<18x192xf32, #tpu.memory_space<vmem>>, %arg7: memref<18x128xf32, #tpu.memory_space<vmem>>) attributes {dimension_semantics = [#tpu.dimension_semantics<parallel>], iteration_bounds = array<i64: 2>, scalar_prefetch = 0 : i64, scratch_operands = 2 : i64, tpu.core_type = #tpu.core_type<tc>, window_params = [{transform_indices = @transform_0, window_bounds = array<i64: 1, 16, 192>}, {pipeline_mode = #tpu.pipeline_mode<synchronous>, transform_indices = @transform_1, window_bounds = array<i64: 192, 512>}, {pipeline_mode = #tpu.pipeline_mode<synchronous>, transform_indices = @transform_2, window_bounds = array<i64: 128, 1280>}, {pipeline_mode = #tpu.pipeline_mode<synchronous>, transform_indices = @transform_3, window_bounds = array<i64: 6, 128>}, {transform_indices = @transform_4, window_bounds = array<i64: 1, 16, 128>}]} {
    %cst = arith.constant 0.000000e+00 : f32
    %0 = vector.broadcast %cst : f32 to vector<1x192xf32>
    %c0 = arith.constant 0 : index
    %c0_0 = arith.constant 0 : index
    %1 = vector.load %arg6[%c0, %c0_0] : memref<18x192xf32, #tpu.memory_space<vmem>>, vector<1x192xf32>
    tpu.vector_store %arg6[%c0, %c0_0], %0 {strides = array<i32>} : memref<18x192xf32, #tpu.memory_space<vmem>>, vector<1x192xf32>,
    %cst_1 = arith.constant 0.000000e+00 : f32
    %2 = vector.broadcast %cst_1 : f32 to vector<1x192xf32>
    %c17 = arith.constant 17 : index
    %c0_2 = arith.constant 0 : index
    %3 = vector.load %arg6[%c17, %c0_2] : memref<18x192xf32, #tpu.memory_space<vmem>>, vector<1x192xf32>
    tpu.vector_store %arg6[%c17, %c0_2], %2 {strides = array<i32>} : memref<18x192xf32, #tpu.memory_space<vmem>>, vector<1x192xf32>,
    %c0_3 = arith.constant 0 : index
    %c0_4 = arith.constant 0 : index
    %c0_5 = arith.constant 0 : index
    %4 = vector.load %arg1[%c0_3, %c0_4, %c0_5] : memref<1x16x192xf32, #tpu.memory_space<vmem>>, vector<1x16x192xf32>
    %5 = vector.shape_cast %4 : vector<1x16x192xf32> to vector<16x192xf32>
    %c1 = arith.constant 1 : index
    %c0_6 = arith.constant 0 : index
    %6 = vector.load %arg6[%c1, %c0_6] : memref<18x192xf32, #tpu.memory_space<vmem>>, vector<16x192xf32>
    tpu.vector_store %arg6[%c1, %c0_6], %5 {strides = array<i32>} : memref<18x192xf32, #tpu.memory_space<vmem>>, vector<16x192xf32>,
    %cst_7 = arith.constant 0.000000e+00 : f32
    %7 = vector.broadcast %cst_7 : f32 to vector<1x128xf32>
    %c0_8 = arith.constant 0 : index
    %c0_9 = arith.constant 0 : index
    %8 = vector.load %arg7[%c0_8, %c0_9] : memref<18x128xf32, #tpu.memory_space<vmem>>, vector<1x128xf32>
    tpu.vector_store %arg7[%c0_8, %c0_9], %7 {strides = array<i32>} : memref<18x128xf32, #tpu.memory_space<vmem>>, vector<1x128xf32>,
    %cst_10 = arith.constant 0.000000e+00 : f32
    %9 = vector.broadcast %cst_10 : f32 to vector<1x128xf32>
    %c17_11 = arith.constant 17 : index
    %c0_12 = arith.constant 0 : index
    %10 = vector.load %arg7[%c17_11, %c0_12] : memref<18x128xf32, #tpu.memory_space<vmem>>, vector<1x128xf32>
    tpu.vector_store %arg7[%c17_11, %c0_12], %9 {strides = array<i32>} : memref<18x128xf32, #tpu.memory_space<vmem>>, vector<1x128xf32>,
    %c0_13 = arith.constant 0 : index
    %c0_14 = arith.constant 0 : index
    %11 = vector.load %arg4[%c0_13, %c0_14] : memref<6x128xf32, #tpu.memory_space<vmem>>, vector<1x128xf32>
    %c1_15 = arith.constant 1 : index
    %c0_16 = arith.constant 0 : index
    %12 = vector.load %arg4[%c1_15, %c0_16] : memref<6x128xf32, #tpu.memory_space<vmem>>, vector<1x128xf32>
    %c2 = arith.constant 2 : index
    %c0_17 = arith.constant 0 : index
    %13 = vector.load %arg4[%c2, %c0_17] : memref<6x128xf32, #tpu.memory_space<vmem>>, vector<1x128xf32>
    %c0_18 = arith.constant 0 : index
    %c0_19 = arith.constant 0 : index
    %14 = vector.load %arg6[%c0_18, %c0_19] : memref<18x192xf32, #tpu.memory_space<vmem>>, vector<16x192xf32>
    %15 = arith.truncf %14 : vector<16x192xf32> to vector<16x192xbf16>
    %c1_20 = arith.constant 1 : index
    %c0_21 = arith.constant 0 : index
    %16 = vector.load %arg6[%c1_20, %c0_21] : memref<18x192xf32, #tpu.memory_space<vmem>>, vector<16x192xf32>
    %17 = arith.truncf %16 : vector<16x192xf32> to vector<16x192xbf16>
    %c2_22 = arith.constant 2 : index
    %c0_23 = arith.constant 0 : index
    %18 = vector.load %arg6[%c2_22, %c0_23] : memref<18x192xf32, #tpu.memory_space<vmem>>, vector<16x192xf32>
    %19 = arith.truncf %18 : vector<16x192xf32> to vector<16x192xbf16>
    %c0_24 = arith.constant 0 : index
    %c0_25 = arith.constant 0 : index
    %20 = vector.load %arg2[%c0_24, %c0_25] : memref<192x512xbf16, #tpu.memory_space<vmem>>, vector<192x128xbf16>
    %cst_26 = arith.constant dense<0.000000e+00> : vector<16x128xf32>
    %21 = tpu.matmul %15, %20, %cst_26 {dimension_numbers = #tpu.dot_dimension_numbers<[1], [0], [0], [1], [0, 0, 1, 1], [], []>} : vector<16x192xbf16>, vector<192x128xbf16>, vector<16x128xf32> -> vector<16x128xf32>
    %c0_27 = arith.constant 0 : index
    %c128 = arith.constant 128 : index
    %22 = vector.load %arg2[%c0_27, %c128] : memref<192x512xbf16, #tpu.memory_space<vmem>>, vector<192x256xbf16>
    %cst_28 = arith.constant dense<0.000000e+00> : vector<16x256xf32>
    %23 = tpu.matmul %17, %22, %cst_28 {dimension_numbers = #tpu.dot_dimension_numbers<[1], [0], [0], [1], [0, 0, 1, 1], [], []>} : vector<16x192xbf16>, vector<192x256xbf16>, vector<16x256xf32> -> vector<16x256xf32>
    %c0_29 = arith.constant 0 : index
    %c384 = arith.constant 384 : index
    %24 = vector.load %arg2[%c0_29, %c384] : memref<192x512xbf16, #tpu.memory_space<vmem>>, vector<192x128xbf16>
    %cst_30 = arith.constant dense<0.000000e+00> : vector<16x128xf32>
    %25 = tpu.matmul %19, %24, %cst_30 {dimension_numbers = #tpu.dot_dimension_numbers<[1], [0], [0], [1], [0, 0, 1, 1], [], []>} : vector<16x192xbf16>, vector<192x128xbf16>, vector<16x128xf32> -> vector<16x128xf32>
    %26 = arith.addf %21, %25 : vector<16x128xf32>
    %27 = vector.extract_strided_slice %23 {offsets = [0, 128], sizes = [16, 128], strides = [1, 1]} : vector<16x256xf32> to vector<16x128xf32>
    %28 = vector.broadcast %12 : vector<1x128xf32> to vector<16x128xf32>
    %29 = arith.addf %27, %28 : vector<16x128xf32>
    %30 = vector.extract_strided_slice %23 {offsets = [0, 0], sizes = [16, 128], strides = [1, 1]} : vector<16x256xf32> to vector<16x128xf32>
    %31 = arith.addf %26, %30 : vector<16x128xf32>
    %32 = vector.broadcast %11 : vector<1x128xf32> to vector<16x128xf32>
    %33 = arith.addf %31, %32 : vector<16x128xf32>
    %cst_31 = arith.constant 0.000000e+00 : f32
    %34 = vector.broadcast %cst_31 : f32 to vector<16x128xf32>
    %35 = arith.maximumf %33, %34 : vector<16x128xf32>
    %c1_32 = arith.constant 1 : index
    %c0_33 = arith.constant 0 : index
    %36 = vector.load %arg7[%c1_32, %c0_33] : memref<18x128xf32, #tpu.memory_space<vmem>>, vector<16x128xf32>
    tpu.vector_store %arg7[%c1_32, %c0_33], %35 {strides = array<i32>} : memref<18x128xf32, #tpu.memory_space<vmem>>, vector<16x128xf32>,
    %c0_34 = arith.constant 0 : index
    %c0_35 = arith.constant 0 : index
    %37 = vector.load %arg7[%c0_34, %c0_35] : memref<18x128xf32, #tpu.memory_space<vmem>>, vector<16x128xf32>
    %38 = arith.truncf %37 : vector<16x128xf32> to vector<16x128xbf16>
    %c0_36 = arith.constant 0 : index
    %c0_37 = arith.constant 0 : index
    %39 = vector.load %arg3[%c0_36, %c0_37] : memref<128x1280xbf16, #tpu.memory_space<vmem>>, vector<128x128xbf16>
    %cst_38 = arith.constant dense<0.000000e+00> : vector<16x128xf32>
    %40 = tpu.matmul %38, %39, %cst_38 {dimension_numbers = #tpu.dot_dimension_numbers<[1], [0], [0], [1], [0, 0, 1, 1], [], []>} : vector<16x128xbf16>, vector<128x128xbf16>, vector<16x128xf32> -> vector<16x128xf32>
    %c1_39 = arith.constant 1 : index
    %c0_40 = arith.constant 0 : index
    %41 = vector.load %arg7[%c1_39, %c0_40] : memref<18x128xf32, #tpu.memory_space<vmem>>, vector<16x128xf32>
    %42 = arith.truncf %41 : vector<16x128xf32> to vector<16x128xbf16>
    %c0_41 = arith.constant 0 : index
    %c128_42 = arith.constant 128 : index
    %43 = vector.load %arg3[%c0_41, %c128_42] : memref<128x1280xbf16, #tpu.memory_space<vmem>>, vector<128x128xbf16>
    %cst_43 = arith.constant dense<0.000000e+00> : vector<16x128xf32>
    %44 = tpu.matmul %42, %43, %cst_43 {dimension_numbers = #tpu.dot_dimension_numbers<[1], [0], [0], [1], [0, 0, 1, 1], [], []>} : vector<16x128xbf16>, vector<128x128xbf16>, vector<16x128xf32> -> vector<16x128xf32>
    %45 = arith.addf %40, %44 : vector<16x128xf32>
    %c2_44 = arith.constant 2 : index
    %c0_45 = arith.constant 0 : index
    %46 = vector.load %arg7[%c2_44, %c0_45] : memref<18x128xf32, #tpu.memory_space<vmem>>, vector<16x128xf32>
    %47 = arith.truncf %46 : vector<16x128xf32> to vector<16x128xbf16>
    %c0_46 = arith.constant 0 : index
    %c256 = arith.constant 256 : index
    %48 = vector.load %arg3[%c0_46, %c256] : memref<128x1280xbf16, #tpu.memory_space<vmem>>, vector<128x128xbf16>
    %cst_47 = arith.constant dense<0.000000e+00> : vector<16x128xf32>
    %49 = tpu.matmul %47, %48, %cst_47 {dimension_numbers = #tpu.dot_dimension_numbers<[1], [0], [0], [1], [0, 0, 1, 1], [], []>} : vector<16x128xbf16>, vector<128x128xbf16>, vector<16x128xf32> -> vector<16x128xf32>
    %50 = arith.addf %45, %49 : vector<16x128xf32>
    %51 = vector.broadcast %13 : vector<1x128xf32> to vector<16x128xf32>
    %52 = arith.addf %50, %51 : vector<16x128xf32>
    %53 = arith.addf %52, %29 : vector<16x128xf32>
    %cst_48 = arith.constant 0.000000e+00 : f32
    %54 = vector.broadcast %cst_48 : f32 to vector<16x128xf32>
    %55 = arith.maximumf %53, %54 : vector<16x128xf32>
    %c1_49 = arith.constant 1 : index
    %c0_50 = arith.constant 0 : index
    %56 = vector.load %arg7[%c1_49, %c0_50] : memref<18x128xf32, #tpu.memory_space<vmem>>, vector<16x128xf32>
    tpu.vector_store %arg7[%c1_49, %c0_50], %55 {strides = array<i32>} : memref<18x128xf32, #tpu.memory_space<vmem>>, vector<16x128xf32>,
    %c3 = arith.constant 3 : index
    %c0_51 = arith.constant 0 : index
    %57 = vector.load %arg4[%c3, %c0_51] : memref<6x128xf32, #tpu.memory_space<vmem>>, vector<1x128xf32>
    %c4 = arith.constant 4 : index
    %c0_52 = arith.constant 0 : index
    %58 = vector.load %arg4[%c4, %c0_52] : memref<6x128xf32, #tpu.memory_space<vmem>>, vector<1x128xf32>
    %c5 = arith.constant 5 : index
    %c0_53 = arith.constant 0 : index
    %59 = vector.load %arg4[%c5, %c0_53] : memref<6x128xf32, #tpu.memory_space<vmem>>, vector<1x128xf32>
    %c0_54 = arith.constant 0 : index
    %c0_55 = arith.constant 0 : index
    %60 = vector.load %arg7[%c0_54, %c0_55] : memref<18x128xf32, #tpu.memory_space<vmem>>, vector<16x128xf32>
    %61 = arith.truncf %60 : vector<16x128xf32> to vector<16x128xbf16>
    %c1_56 = arith.constant 1 : index
    %c0_57 = arith.constant 0 : index
    %62 = vector.load %arg7[%c1_56, %c0_57] : memref<18x128xf32, #tpu.memory_space<vmem>>, vector<16x128xf32>
    %63 = arith.truncf %62 : vector<16x128xf32> to vector<16x128xbf16>
    %c2_58 = arith.constant 2 : index
    %c0_59 = arith.constant 0 : index
    %64 = vector.load %arg7[%c2_58, %c0_59] : memref<18x128xf32, #tpu.memory_space<vmem>>, vector<16x128xf32>
    %65 = arith.truncf %64 : vector<16x128xf32> to vector<16x128xbf16>
    %c0_60 = arith.constant 0 : index
    %c384_61 = arith.constant 384 : index
    %66 = vector.load %arg3[%c0_60, %c384_61] : memref<128x1280xbf16, #tpu.memory_space<vmem>>, vector<128x128xbf16>
    %cst_62 = arith.constant dense<0.000000e+00> : vector<16x128xf32>
    %67 = tpu.matmul %61, %66, %cst_62 {dimension_numbers = #tpu.dot_dimension_numbers<[1], [0], [0], [1], [0, 0, 1, 1], [], []>} : vector<16x128xbf16>, vector<128x128xbf16>, vector<16x128xf32> -> vector<16x128xf32>
    %c0_63 = arith.constant 0 : index
    %c512 = arith.constant 512 : index
    %68 = vector.load %arg3[%c0_63, %c512] : memref<128x1280xbf16, #tpu.memory_space<vmem>>, vector<128x256xbf16>
    %cst_64 = arith.constant dense<0.000000e+00> : vector<16x256xf32>
    %69 = tpu.matmul %63, %68, %cst_64 {dimension_numbers = #tpu.dot_dimension_numbers<[1], [0], [0], [1], [0, 0, 1, 1], [], []>} : vector<16x128xbf16>, vector<128x256xbf16>, vector<16x256xf32> -> vector<16x256xf32>
    %c0_65 = arith.constant 0 : index
    %c768 = arith.constant 768 : index
    %70 = vector.load %arg3[%c0_65, %c768] : memref<128x1280xbf16, #tpu.memory_space<vmem>>, vector<128x128xbf16>
    %cst_66 = arith.constant dense<0.000000e+00> : vector<16x128xf32>
    %71 = tpu.matmul %65, %70, %cst_66 {dimension_numbers = #tpu.dot_dimension_numbers<[1], [0], [0], [1], [0, 0, 1, 1], [], []>} : vector<16x128xbf16>, vector<128x128xbf16>, vector<16x128xf32> -> vector<16x128xf32>
    %72 = arith.addf %67, %71 : vector<16x128xf32>
    %73 = vector.extract_strided_slice %69 {offsets = [0, 128], sizes = [16, 128], strides = [1, 1]} : vector<16x256xf32> to vector<16x128xf32>
    %74 = vector.broadcast %58 : vector<1x128xf32> to vector<16x128xf32>
    %75 = arith.addf %73, %74 : vector<16x128xf32>
    %76 = vector.extract_strided_slice %69 {offsets = [0, 0], sizes = [16, 128], strides = [1, 1]} : vector<16x256xf32> to vector<16x128xf32>
    %77 = arith.addf %72, %76 : vector<16x128xf32>
    %78 = vector.broadcast %57 : vector<1x128xf32> to vector<16x128xf32>
    %79 = arith.addf %77, %78 : vector<16x128xf32>
    %cst_67 = arith.constant 0.000000e+00 : f32
    %80 = vector.broadcast %cst_67 : f32 to vector<16x128xf32>
    %81 = arith.maximumf %79, %80 : vector<16x128xf32>
    %c1_68 = arith.constant 1 : index
    %c0_69 = arith.constant 0 : index
    %82 = vector.load %arg7[%c1_68, %c0_69] : memref<18x128xf32, #tpu.memory_space<vmem>>, vector<16x128xf32>
    tpu.vector_store %arg7[%c1_68, %c0_69], %81 {strides = array<i32>} : memref<18x128xf32, #tpu.memory_space<vmem>>, vector<16x128xf32>,
    %c0_70 = arith.constant 0 : index
    %c0_71 = arith.constant 0 : index
    %83 = vector.load %arg7[%c0_70, %c0_71] : memref<18x128xf32, #tpu.memory_space<vmem>>, vector<16x128xf32>
    %84 = arith.truncf %83 : vector<16x128xf32> to vector<16x128xbf16>
    %c0_72 = arith.constant 0 : index
    %c896 = arith.constant 896 : index
    %85 = vector.load %arg3[%c0_72, %c896] : memref<128x1280xbf16, #tpu.memory_space<vmem>>, vector<128x128xbf16>
    %cst_73 = arith.constant dense<0.000000e+00> : vector<16x128xf32>
    %86 = tpu.matmul %84, %85, %cst_73 {dimension_numbers = #tpu.dot_dimension_numbers<[1], [0], [0], [1], [0, 0, 1, 1], [], []>} : vector<16x128xbf16>, vector<128x128xbf16>, vector<16x128xf32> -> vector<16x128xf32>
    %c1_74 = arith.constant 1 : index
    %c0_75 = arith.constant 0 : index
    %87 = vector.load %arg7[%c1_74, %c0_75] : memref<18x128xf32, #tpu.memory_space<vmem>>, vector<16x128xf32>
    %88 = arith.truncf %87 : vector<16x128xf32> to vector<16x128xbf16>
    %c0_76 = arith.constant 0 : index
    %c1024 = arith.constant 1024 : index
    %89 = vector.load %arg3[%c0_76, %c1024] : memref<128x1280xbf16, #tpu.memory_space<vmem>>, vector<128x128xbf16>
    %cst_77 = arith.constant dense<0.000000e+00> : vector<16x128xf32>
    %90 = tpu.matmul %88, %89, %cst_77 {dimension_numbers = #tpu.dot_dimension_numbers<[1], [0], [0], [1], [0, 0, 1, 1], [], []>} : vector<16x128xbf16>, vector<128x128xbf16>, vector<16x128xf32> -> vector<16x128xf32>
    %91 = arith.addf %86, %90 : vector<16x128xf32>
    %c2_78 = arith.constant 2 : index
    %c0_79 = arith.constant 0 : index
    %92 = vector.load %arg7[%c2_78, %c0_79] : memref<18x128xf32, #tpu.memory_space<vmem>>, vector<16x128xf32>
    %93 = arith.truncf %92 : vector<16x128xf32> to vector<16x128xbf16>
    %c0_80 = arith.constant 0 : index
    %c1152 = arith.constant 1152 : index
    %94 = vector.load %arg3[%c0_80, %c1152] : memref<128x1280xbf16, #tpu.memory_space<vmem>>, vector<128x128xbf16>
    %cst_81 = arith.constant dense<0.000000e+00> : vector<16x128xf32>
    %95 = tpu.matmul %93, %94, %cst_81 {dimension_numbers = #tpu.dot_dimension_numbers<[1], [0], [0], [1], [0, 0, 1, 1], [], []>} : vector<16x128xbf16>, vector<128x128xbf16>, vector<16x128xf32> -> vector<16x128xf32>
    %96 = arith.addf %91, %95 : vector<16x128xf32>
    %97 = vector.broadcast %59 : vector<1x128xf32> to vector<16x128xf32>
    %98 = arith.addf %96, %97 : vector<16x128xf32>
    %99 = arith.addf %98, %75 : vector<16x128xf32>
    %cst_82 = arith.constant 0.000000e+00 : f32
    %100 = vector.broadcast %cst_82 : f32 to vector<16x128xf32>
    %101 = arith.maximumf %99, %100 : vector<16x128xf32>
    %c0_83 = arith.constant 0 : index
    %c0_84 = arith.constant 0 : index
    %c0_85 = arith.constant 0 : index
    %102 = vector.load %arg5[%c0_83, %c0_84, %c0_85] : memref<1x16x128xf32, #tpu.memory_space<vmem>>, vector<1x16x128xf32>
    %103 = vector.shape_cast %102 : vector<1x16x128xf32> to vector<16x128xf32>
    %104 = vector.shape_cast %101 : vector<16x128xf32> to vector<1x16x128xf32>
    tpu.vector_store %arg5[%c0_83, %c0_84, %c0_85], %104 {strides = array<i32>} : memref<1x16x128xf32, #tpu.memory_space<vmem>>, vector<1x16x128xf32>,
    return
  }
  func.func @transform_0(%arg0: i32) -> (i32, i32, i32) {
    %c0_i32 = arith.constant 0 : i32
    %c0_i32_0 = arith.constant 0 : i32
    %c0_i32_1 = arith.constant 0 : i32
    return %arg0, %c0_i32, %c0_i32_0 : i32, i32, i32
  }
  func.func @transform_1(%arg0: i32) -> (i32, i32) {
    %c0_i32 = arith.constant 0 : i32
    %c0_i32_0 = arith.constant 0 : i32
    %c0_i32_1 = arith.constant 0 : i32
    return %c0_i32, %c0_i32_0 : i32, i32
  }
  func.func @transform_2(%arg0: i32) -> (i32, i32) {
    %c0_i32 = arith.constant 0 : i32
    %c0_i32_0 = arith.constant 0 : i32
    %c0_i32_1 = arith.constant 0 : i32
    return %c0_i32, %c0_i32_0 : i32, i32
  }
  func.func @transform_3(%arg0: i32) -> (i32, i32) {
    %c0_i32 = arith.constant 0 : i32
    %c0_i32_0 = arith.constant 0 : i32
    %c0_i32_1 = arith.constant 0 : i32
    return %c0_i32, %c0_i32_0 : i32, i32
  }
  func.func @transform_4(%arg0: i32) -> (i32, i32, i32) {
    %c0_i32 = arith.constant 0 : i32
    %c0_i32_0 = arith.constant 0 : i32
    %c0_i32_1 = arith.constant 0 : i32
    return %arg0, %c0_i32, %c0_i32_0 : i32, i32, i32
  }
}

</mosaic_0001>

<llo_original>
// kernel: decoder_block.1
$region0: #{decoder_block.1}
  #allocation0 [shape = 'u32[]', space=smem, size = 0x4, offset = 0x4, fixed_abs, tag = 'smem constant byte address 0x4 - core index']
  #allocation1 [shape = 'u32[72,128]{1,0:T(1,128)}', space=vmem, size = 0x9000, scoped, tag = 'internal scratch']
  #allocation2 [shape = 'f32[18,192]{1,0:T(8,128)}', space=vmem, size = 0x6000, scoped, tag = 'scratch operand']
  #allocation3 [shape = 'f32[18,128]{1,0:T(8,128)}', space=vmem, size = 0x3000, scoped, tag = 'scratch operand']
  %s0 = inlined_call_operand.vmem [shape: f32[2,16,192], index: 0, kind: input, shape index: {}]
  %s1 = inlined_call_operand.vmem [shape: bf16[192,512], index: 1, kind: input, shape index: {}]
  %s2 = inlined_call_operand.vmem [shape: bf16[128,1280], index: 2, kind: input, shape index: {}]
  %s3 = inlined_call_operand.vmem [shape: f32[6,128], index: 3, kind: input, shape index: {}]
  %s4 = inlined_call_operand.vmem [shape: f32[2,16,128], index: 4, kind: output, shape index: {}]
  %s5 = sld [smem:[#allocation0]]
  $region49: #{decoder_block.1} parent=0
    _
  %s7 = ssub.s32 1, %s5
  %s8 = scalar_select 0, %s7, %s5
  loop: start=0, step=1, limit=4
  $region2: #{decoder_block.1} parent=0 // loop_pre_header
    _
  $region3: #{decoder_block.1} parent=0 // loop_header
    %s10 = sphi 0, %s14
    %p11 = scmp.ge.s32.totalorder %s10, 4
    %s20 = sphi 0, %s22
    %s23 = sphi 0, %s20
    %s24 = sphi 0, %s23
    %s40 = sphi 0, %s24
    %s44 = sphi 0, %s44
    %s46 = sphi 0, %s44
    %s47 = sphi 0, %s46
    %s61 = sphi 0, %s47
    %s65 = sphi 0, %s65
    %s67 = sphi 0, %s65
    %s68 = sphi 0, %s67
    %s82 = sphi 0, %s68
    %s86 = sphi 0, %s86
    %s88 = sphi 0, %s86
    %s89 = sphi 0, %s88
    %s103 = sphi 0, %s89
    %s109 = sphi 0, %s111
    %s112 = sphi 0, %s109
    %s113 = sphi 0, %s112
    %s129 = sphi 0, %s113
  $region4: #{decoder_block.1} parent=0 // loop_header_branch
    %13 = sbr.rel (%p11) target = $region8
  $region5: #{decoder_block.1} parent=0 // loop_body
    %s15 = ssub.s32 %s10, 1
    %s16 = ssub.s32 %s10, 2
    %s17 = sadd.s32 %s10, 1
    %s18 = ssub.s32 %s10, %s17
    %p19 = scmp.eq.s32.totalorder %s18, 0
    %s21 = sadd.s32 %s20, 1
    %s22 = scalar_select %p19, %s20, %s21
    %p25 = pneg %p19
    %p26 = scmp.eq.s32.totalorder %s10, 1
    %p27 = por %p25, %p26
    %p28 = scmp.ne.s32.totalorder %s20, %s23
    %p29 = scmp.eq.s32.totalorder %s10, 0
    %p30 = por %p28, %p29
    %p31 = scmp.ne.s32.totalorder %s20, %s23
    %p32 = scmp.eq.s32.totalorder %s15, 1
    %p33 = por %p31, %p32
    %p34 = scmp.ne.s32.totalorder %s23, %s24
    %p35 = scmp.eq.s32.totalorder %s15, 0
    %p36 = por %p34, %p35
    %p37 = scmp.ne.s32.totalorder %s23, %s24
    %p38 = scmp.eq.s32.totalorder %s16, 1
    %p39 = por %p37, %p38
    %p41 = scmp.ne.s32.totalorder %s24, %s40
    %p42 = scmp.eq.s32.totalorder %s16, 0
    %p43 = por %p41, %p42
    %s45 = sadd.s32 %s44, 1
    %p48 = scmp.eq.s32.totalorder %s10, 1
    %p49 = scmp.ne.s32.totalorder %s44, %s46
    %p50 = scmp.eq.s32.totalorder %s10, 0
    %p51 = por %p49, %p50
    %p52 = scmp.ne.s32.totalorder %s44, %s46
    %p53 = scmp.eq.s32.totalorder %s15, 1
    %p54 = por %p52, %p53
    %p55 = scmp.ne.s32.totalorder %s46, %s47
    %p56 = scmp.eq.s32.totalorder %s15, 0
    %p57 = por %p55, %p56
    %p58 = scmp.ne.s32.totalorder %s46, %s47
    %p59 = scmp.eq.s32.totalorder %s16, 1
    %p60 = por %p58, %p59
    %p62 = scmp.ne.s32.totalorder %s47, %s61
    %p63 = scmp.eq.s32.totalorder %s16, 0
    %p64 = por %p62, %p63
    %s66 = sadd.s32 %s65, 1
    %p69 = scmp.eq.s32.totalorder %s10, 1
    %p70 = scmp.ne.s32.totalorder %s65, %s67
    %p71 = scmp.eq.s32.totalorder %s10, 0
    %p72 = por %p70, %p71
    %p73 = scmp.ne.s32.totalorder %s65, %s67
    %p74 = scmp.eq.s32.totalorder %s15, 1
    %p75 = por %p73, %p74
    %p76 = scmp.ne.s32.totalorder %s67, %s68
    %p77 = scmp.eq.s32.totalorder %s15, 0
    %p78 = por %p76, %p77
    %p79 = scmp.ne.s32.totalorder %s67, %s68
    %p80 = scmp.eq.s32.totalorder %s16, 1
    %p81 = por %p79, %p80
    %p83 = scmp.ne.s32.totalorder %s68, %s82
    %p84 = scmp.eq.s32.totalorder %s16, 0
    %p85 = por %p83, %p84
    %s87 = sadd.s32 %s86, 1
    %p90 = scmp.eq.s32.totalorder %s10, 1
    %p91 = scmp.ne.s32.totalorder %s86, %s88
    %p92 = scmp.eq.s32.totalorder %s10, 0
    %p93 = por %p91, %p92
    %p94 = scmp.ne.s32.totalorder %s86, %s88
    %p95 = scmp.eq.s32.totalorder %s15, 1
    %p96 = por %p94, %p95
    %p97 = scmp.ne.s32.totalorder %s88, %s89
    %p98 = scmp.eq.s32.totalorder %s15, 0
    %p99 = por %p97, %p98
    %p100 = scmp.ne.s32.totalorder %s88, %s89
    %p101 = scmp.eq.s32.totalorder %s16, 1
    %p102 = por %p100, %p101
    %p104 = scmp.ne.s32.totalorder %s89, %s103
    %p105 = scmp.eq.s32.totalorder %s16, 0
    %p106 = por %p104, %p105
    %s107 = ssub.s32 %s10, %s17
    %p108 = scmp.eq.s32.totalorder %s107, 0
    %s110 = sadd.s32 %s109, 1
    %s111 = scalar_select %p108, %s109, %s110
    %p114 = pneg %p108
    %p115 = scmp.eq.s32.totalorder %s10, 1
    %p116 = por %p114, %p115
    %p117 = scmp.ne.s32.totalorder %s109, %s112
    %p118 = scmp.eq.s32.totalorder %s10, 0
    %p119 = por %p117, %p118
    %p120 = scmp.ne.s32.totalorder %s109, %s112
    %p121 = scmp.eq.s32.totalorder %s15, 1
    %p122 = por %p120, %p121
    %p123 = scmp.ne.s32.totalorder %s112, %s113
    %p124 = scmp.eq.s32.totalorder %s15, 0
    %p125 = por %p123, %p124
    %p126 = scmp.ne.s32.totalorder %s112, %s113
    %p127 = scmp.eq.s32.totalorder %s16, 1
    %p128 = por %p126, %p127
    %p130 = scmp.ne.s32.totalorder %s113, %s129
    %p131 = scmp.eq.s32.totalorder %s16, 0
    %p132 = por %p130, %p131
    %p133 = scmp.le.s32.totalorder 1, %s10
    %p134 = scmp.lt.s32.totalorder %s10, 3
    %p135 = pnand %p133, %p134
    %p136 = pneg %p135
    // Predicated region
    $region9: #{decoder_block.1} parent=5 // pred_check
      _
    $region10: #{decoder_block.1} parent=5 // pred_check_branch
      %138 = sbr.rel (%p135) target = $region12
    $region11: #{decoder_block.1} parent=5 // pred_region
      %s139 = ssub.s32 %s10, 1
      // Predicated region
      $region13: #{decoder_block.1} parent=11 // pred_check
        %p140 = pneg %p57
      $region14: #{decoder_block.1} parent=11 // pred_check_branch
        %142 = sbr.rel (%p140) target = $region16
      $region15: #{decoder_block.1} parent=11 // pred_region
        _
      $region16: #{decoder_block.1} parent=11 // pred_fallthru
        _
      // Predicated region
      $region17: #{decoder_block.1} parent=11 // pred_check
        %p143 = pneg %p78
      $region18: #{decoder_block.1} parent=11 // pred_check_branch
        %145 = sbr.rel (%p143) target = $region20
      $region19: #{decoder_block.1} parent=11 // pred_region
        _
      $region20: #{decoder_block.1} parent=11 // pred_fallthru
        _
      // Predicated region
      $region21: #{decoder_block.1} parent=11 // pred_check
        %p146 = pneg %p99
      $region22: #{decoder_block.1} parent=11 // pred_check_branch
        %148 = sbr.rel (%p146) target = $region24
      $region23: #{decoder_block.1} parent=11 // pred_region
        _
      $region24: #{decoder_block.1} parent=11 // pred_fallthru
        _
    $region12: #{decoder_block.1} parent=5 // pred_fallthru
      _
    %p149 = scmp.lt.s32.totalorder %s10, 2
    // Predicated region
    $region25: #{decoder_block.1} parent=5 // pred_check
      %p150 = pneg %p149
    $region26: #{decoder_block.1} parent=5 // pred_check_branch
      %152 = sbr.rel (%p150) target = $region28
    $region27: #{decoder_block.1} parent=5 // pred_region
      // Predicated region
      $region29: #{decoder_block.1} parent=27 // pred_check
        %p153 = pneg %p30
      $region30: #{decoder_block.1} parent=27 // pred_check_branch
        %155 = sbr.rel (%p153) target = $region32
      $region31: #{decoder_block.1} parent=27 // pred_region
        %p156 = scmp.lt.s32.totalorder %s10, 1
        %s157 = scalar_select %p156, %s10, 1
        %s158 = smul.addr %s157, 4
        %s159 = smul.addr %s158, 8
        %s160 = scalar_lea.vmem %s0, %s159
      $region32: #{decoder_block.1} parent=27 // pred_fallthru
        _
    $region28: #{decoder_block.1} parent=5 // pred_fallthru
      _
    %p161 = scmp.le.s32.totalorder 1, %s10
    %p162 = scmp.lt.s32.totalorder %s10, 3
    %p163 = pnand %p161, %p162
    %p164 = pneg %p163
    // Predicated region
    $region33: #{decoder_block.1} parent=5 // pred_check
      _
    $region34: #{decoder_block.1} parent=5 // pred_check_branch
      %166 = sbr.rel (%p163) target = $region36
    $region35: #{decoder_block.1} parent=5 // pred_region
      %s167 = ssub.s32 %s10, 1
      %p168 = scmp.lt.s32.totalorder %s15, 1
      %s169 = scalar_select %p168, %s15, 1
      %s170 = smul.addr %s169, 4
      %s171 = smul.addr %s170, 8
      %s172 = scalar_lea.vmem %s0, %s171
      %p173 = pneg %p36
      %p174 = pneg %p33
      %p175 = pneg %p57
      %p176 = pneg %p54
      %p177 = pneg %p78
      %p178 = pneg %p75
      %p179 = pneg %p99
      %p180 = pneg %p96
      %p181 = pneg %p125
      %p182 = pneg %p122
      %p183 = scmp.lt.s32.totalorder %s15, 1
      %s184 = scalar_select %p183, %s15, 1
      %s185 = smul.addr %s184, 2
      %s186 = smul.addr %s185, 8
      %s187 = scalar_lea.vmem %s4, %s186
      %p188 = scmp.lt.s32.totalorder %s15, 1
      %s189 = scalar_select %p188, %s15, 1
      %s190 = smul.addr %s189, 4
      %s191 = smul.addr %s190, 8
      %s192 = scalar_lea.vmem %s0, %s191
      %p193 = scmp.lt.s32.totalorder %s15, 1
      %s194 = scalar_select %p193, %s15, 1
      %s195 = smul.addr %s194, 2
      %s196 = smul.addr %s195, 8
      %s197 = scalar_lea.vmem %s4, %s196
      %v199 = vlaneseq
      %vm200 = vcmp.ge.s32.totalorder %v199, 0
      %vm201 = vcmp.lt.s32.totalorder %v199, 192
      %vm202 = vmand %vm200, %vm201
      %203 = vst.msk [vmem:[#allocation2] ss:$8 sm:$0x3] %vm202, 0.0
      %204 = vst.msk [vmem:[#allocation2] ss:$8 sm:$0x0] %vm202, 0.0
      %s205 = scalar_lea.vmem [#allocation2], 33
      %206 = vst.msk [vmem:[%s205] ss:$8 sm:$0x3] %vm202, 0.0
      %207 = vst.msk [vmem:[%s205] ss:$8 sm:$0x0] %vm202, 0.0
      %v208 = vld [vmem:[%s192] sm:$0xff]
      %v209 = vld [vmem:[%s192 + $0x8] sm:$0xff]
      %v210 = vld [vmem:[%s192 + $0x10] sm:$0xff]
      %v211 = vld [vmem:[%s192 + $0x18] sm:$0xff]
      %vm216 = vcmask 1040384
      %v217 = vrot.slane %v208, 7
      %v218 = vrot.slane %v209, 7
      %v219 = vrot.slane %v210, 7
      %v220 = vsel %vm216, %v217, %v219
      %v221 = vrot.slane %v211, 7
      %v222 = vsel %vm216, %v218, %v221
      %229 = vst [vmem:[#allocation2] sm:$0xfe] %v217
      %vm230 = vcmask 523265
      %231 = vst.msk [vmem:[#allocation2 + $0x8] sm:$0xfe] %vm230, %v218
      %232 = vst [vmem:[#allocation2 + $0x10] sm:$0xff] %v220
      %vm233 = vcmask 523264
      %234 = vst.msk [vmem:[#allocation2 + $0x18] sm:$0xff] %vm233, %v222
      %235 = vst [vmem:[#allocation2 + $0x20] sm:$0x1] %v219
      %vm236 = vcmask 516096
      %237 = vst.msk [vmem:[#allocation2 + $0x28] sm:$0x1] %vm236, %v221
      %238 = vst [vmem:[#allocation3] sm:$0x1] 0.0
      %239 = vst [vmem:[#allocation3 + $0x11] sm:$0x1] 0.0
      %v240 = vld [vmem:[%s3] sm:$0x1]
      %v241 = vld [vmem:[%s3 + $0x1] sm:$0x1]
      %v242 = vld [vmem:[%s3 + $0x2] sm:$0x1]
      %v243 = vld [vmem:[#allocation2] sm:$0xff]
      %v244 = vld [vmem:[#allocation2 + $0x8] sm:$0xff]
      %v245 = vld [vmem:[#allocation2 + $0x10] sm:$0xff]
      %v246 = vld [vmem:[#allocation2 + $0x18] sm:$0xff]
      %v247 = vpack.c.bf16 %v245, %v243
      %v248 = vpack.c.bf16 %v246, %v244
      %v249 = vld [vmem:[#allocation2] sm:$0xfe]
      %v250 = vld [vmem:[#allocation2 + $0x8] sm:$0xfe]
      %v251 = vld [vmem:[#allocation2 + $0x20] sm:$0x1]
      %v252 = vld [vmem:[#allocation2 + $0x28] sm:$0x1]
      %v253 = vpack.c.bf16 %v245, %v249
      %v254 = vpack.c.bf16 %v246, %v250
      %v255 = vpack.c.bf16 %v251, %v251
      %v256 = vpack.c.bf16 %v252, %v252
      %v257 = vld [vmem:[#allocation2] sm:$0xfc]
      %v258 = vld [vmem:[#allocation2 + $0x8] sm:$0xfc]
      %v259 = vld [vmem:[#allocation2 + $0x20] sm:$0x3]
      %v260 = vld [vmem:[#allocation2 + $0x28] sm:$0x3]
      %v261 = vpack.c.bf16 %v245, %v257
      %v262 = vpack.c.bf16 %v246, %v258
      %v263 = vpack.c.bf16 %v259, %v259
      %v264 = vpack.c.bf16 %v260, %v260
      %v265 = vld [vmem:[%s1] sm:$0xf]
      %v266 = vld [vmem:[%s1 + $0x10] sm:$0xf]
      %v267 = vld [vmem:[%s1 + $0x20] sm:$0xf]
      %v268 = vld [vmem:[%s1 + $0x30] sm:$0xf]
      %v269 = vld [vmem:[%s1 + $0x40] sm:$0xf]
      %v270 = vld [vmem:[%s1 + $0x50] sm:$0xf]
      %v271 = vld [vmem:[%s1 + $0x60] sm:$0xf]
      %v272 = vld [vmem:[%s1 + $0x70] sm:$0xf]
      %v273 = vld [vmem:[%s1 + $0x80] sm:$0xf]
      %v274 = vld [vmem:[%s1 + $0x90] sm:$0xf]
      %v275 = vld [vmem:[%s1 + $0xa0] sm:$0xf]
      %v276 = vld [vmem:[%s1 + $0xb0] sm:$0xf]
      %v277 = vld [vmem:[%s1 + $0xc0] sm:$0xf]
      %v278 = vld [vmem:[%s1 + $0xd0] sm:$0xf]
      %v279 = vld [vmem:[%s1 + $0xe0] sm:$0xf]
      %v280 = vld [vmem:[%s1 + $0xf0] sm:$0xf]
      %v281 = vld [vmem:[%s1 + $0x100] sm:$0xf]
      %v282 = vld [vmem:[%s1 + $0x110] sm:$0xf]
      %v283 = vld [vmem:[%s1 + $0x120] sm:$0xf]
      %v284 = vld [vmem:[%s1 + $0x130] sm:$0xf]
      %v285 = vld [vmem:[%s1 + $0x140] sm:$0xf]
      %v286 = vld [vmem:[%s1 + $0x150] sm:$0xf]
      %v287 = vld [vmem:[%s1 + $0x160] sm:$0xf]
      %v288 = vld [vmem:[%s1 + $0x170] sm:$0xf]
      %v289 = vld [vmem:[%s1 + $0x4] sm:$0xff]
      %v290 = vld [vmem:[%s1 + $0x14] sm:$0xff]
      %v291 = vld [vmem:[%s1 + $0x24] sm:$0xff]
      %v292 = vld [vmem:[%s1 + $0x34] sm:$0xff]
      %v293 = vld [vmem:[%s1 + $0x44] sm:$0xff]
      %v294 = vld [vmem:[%s1 + $0x54] sm:$0xff]
      %v295 = vld [vmem:[%s1 + $0x64] sm:$0xff]
      %v296 = vld [vmem:[%s1 + $0x74] sm:$0xff]
      %v297 = vld [vmem:[%s1 + $0x84] sm:$0xff]
      %v298 = vld [vmem:[%s1 + $0x94] sm:$0xff]
      %v299 = vld [vmem:[%s1 + $0xa4] sm:$0xff]
      %v300 = vld [vmem:[%s1 + $0xb4] sm:$0xff]
      %v301 = vld [vmem:[%s1 + $0xc4] sm:$0xff]
      %v302 = vld [vmem:[%s1 + $0xd4] sm:$0xff]
      %v303 = vld [vmem:[%s1 + $0xe4] sm:$0xff]
      %v304 = vld [vmem:[%s1 + $0xf4] sm:$0xff]
      %v305 = vld [vmem:[%s1 + $0x104] sm:$0xff]
      %v306 = vld [vmem:[%s1 + $0x114] sm:$0xff]
      %v307 = vld [vmem:[%s1 + $0x124] sm:$0xff]
      %v308 = vld [vmem:[%s1 + $0x134] sm:$0xff]
      %v309 = vld [vmem:[%s1 + $0x144] sm:$0xff]
      %v310 = vld [vmem:[%s1 + $0x154] sm:$0xff]
      %v311 = vld [vmem:[%s1 + $0x164] sm:$0xff]
      %v312 = vld [vmem:[%s1 + $0x174] sm:$0xff]
      %vm313 = vsmask.f32 7424
      %v315 = vshrl.u32 %v253, 16
      %v317 = vshll.u32 %v253, 16
      %v319 = vrot.slane %v317, 1
      %v320 = vor.u32 %v315, %v319
      %v322 = vshll.u32 %v255, 16
      %v324 = vrot.slane %v322, 1
      %v325 = vsel %vm313, %v320, %v324
      %v327 = vshrl.u32 %v254, 16
      %v329 = vshll.u32 %v254, 16
      %v331 = vrot.slane %v329, 1
      %v332 = vor.u32 %v327, %v331
      %v334 = vshll.u32 %v256, 16
      %v336 = vrot.slane %v334, 1
      %v337 = vsel %vm313, %v332, %v336
      %v363 = vunpack.c.l.b16 %v289
      %v364 = vunpack.c.h.b16 %v289
      %v365 = vunpack.c.l.b16 %v290
      %v366 = vunpack.c.h.b16 %v290
      %v367 = vunpack.c.l.b16 %v291
      %v368 = vunpack.c.h.b16 %v291
      %v369 = vunpack.c.l.b16 %v292
      %v370 = vunpack.c.h.b16 %v292
      %v371 = vunpack.c.l.b16 %v293
      %v372 = vunpack.c.h.b16 %v293
      %v373 = vunpack.c.l.b16 %v294
      %v374 = vunpack.c.h.b16 %v294
      %v375 = vunpack.c.l.b16 %v295
      %v376 = vunpack.c.h.b16 %v295
      %v377 = vunpack.c.l.b16 %v296
      %v378 = vunpack.c.h.b16 %v296
      %v379 = vunpack.c.l.b16 %v297
      %v380 = vunpack.c.h.b16 %v297
      %v381 = vunpack.c.l.b16 %v298
      %v382 = vunpack.c.h.b16 %v298
      %v383 = vunpack.c.l.b16 %v299
      %v384 = vunpack.c.h.b16 %v299
      %v385 = vunpack.c.l.b16 %v300
      %v386 = vunpack.c.h.b16 %v300
      %v387 = vunpack.c.l.b16 %v301
      %v388 = vunpack.c.h.b16 %v301
      %v389 = vunpack.c.l.b16 %v302
      %v390 = vunpack.c.h.b16 %v302
      %v391 = vunpack.c.l.b16 %v303
      %v392 = vunpack.c.h.b16 %v303
      %v393 = vunpack.c.l.b16 %v304
      %v394 = vunpack.c.h.b16 %v304
      %v395 = vunpack.c.l.b16 %v305
      %v396 = vunpack.c.h.b16 %v305
      %v397 = vunpack.c.l.b16 %v306
      %v398 = vunpack.c.h.b16 %v306
      %v399 = vunpack.c.l.b16 %v307
      %v400 = vunpack.c.h.b16 %v307
      %v401 = vunpack.c.l.b16 %v308
      %v402 = vunpack.c.h.b16 %v308
      %v403 = vunpack.c.l.b16 %v309
      %v404 = vunpack.c.h.b16 %v309
      %v405 = vunpack.c.l.b16 %v310
      %v406 = vunpack.c.h.b16 %v310
      %v407 = vunpack.c.l.b16 %v311
      %v408 = vunpack.c.h.b16 %v311
      %v409 = vunpack.c.l.b16 %v312
      %v410 = vunpack.c.h.b16 %v312
      %v411 = vpack.c.b16 %v365, %v363
      %v412 = vpack.c.b16 %v366, %v364
      %v413 = vpack.c.b16 %v369, %v367
      %v414 = vpack.c.b16 %v370, %v368
      %v415 = vpack.c.b16 %v373, %v371
      %v416 = vpack.c.b16 %v374, %v372
      %v417 = vpack.c.b16 %v377, %v375
      %v418 = vpack.c.b16 %v378, %v376
      %v419 = vpack.c.b16 %v381, %v379
      %v420 = vpack.c.b16 %v382, %v380
      %v421 = vpack.c.b16 %v385, %v383
      %v422 = vpack.c.b16 %v386, %v384
      %v423 = vpack.c.b16 %v389, %v387
      %v424 = vpack.c.b16 %v390, %v388
      %v425 = vpack.c.b16 %v393, %v391
      %v426 = vpack.c.b16 %v394, %v392
      %v427 = vpack.c.b16 %v397, %v395
      %v428 = vpack.c.b16 %v398, %v396
      %v429 = vpack.c.b16 %v401, %v399
      %v430 = vpack.c.b16 %v402, %v400
      %v431 = vpack.c.b16 %v405, %v403
      %v432 = vpack.c.b16 %v406, %v404
      %v433 = vpack.c.b16 %v409, %v407
      %v434 = vpack.c.b16 %v410, %v408
      %v460 = vsel %vm233, %v337, 0
      %462 = vmatpush.bf16.msra.mxu0 %v425
      %463 = vmatpush.bf16.msra.mxu0 %v423
      %464 = vmatpush.bf16.msra.mxu0 %v421
      %465 = vmatpush.bf16.msra.mxu0 %v419
      %466 = vmatpush.bf16.msra.mxu0 %v417
      %467 = vmatpush.bf16.msra.mxu0 %v415
      %468 = vmatpush.bf16.msra.mxu0 %v413
      %469 = vmatpush.bf16.msra.mxu0 %v411
      %470 = vmatmul.bf16.gmra.mxu0 %v325
      %v471 = vpop.f32.mrf.mxu0
      %v472 = vadd.f32 0.0, %v471
      %v473 = vpop.f32.mrf.mxu0
      %v474 = vadd.f32 0.0, %v473
      %475 = vdwg.mxu0
      %476 = vmatpush.bf16.msra.mxu0 0
      %477 = vmatpush.bf16.msra.mxu0 0
      %478 = vmatpush.bf16.msra.mxu0 0
      %479 = vmatpush.bf16.msra.mxu0 0
      %480 = vmatpush.bf16.msra.mxu0 %v433
      %481 = vmatpush.bf16.msra.mxu0 %v431
      %482 = vmatpush.bf16.msra.mxu0 %v429
      %483 = vmatpush.bf16.msra.mxu0 %v427
      %484 = vmatmul.bf16.gmra.mxu0 %v460
      %v485 = vpop.f32.mrf.mxu0
      %v486 = vadd.f32 %v472, %v485
      %v487 = vpop.f32.mrf.mxu0
      %v488 = vadd.f32 %v474, %v487
      %489 = vdwg.mxu0
      %490 = vmatpush.bf16.msra.mxu0 %v426
      %491 = vmatpush.bf16.msra.mxu0 %v424
      %492 = vmatpush.bf16.msra.mxu0 %v422
      %493 = vmatpush.bf16.msra.mxu0 %v420
      %494 = vmatpush.bf16.msra.mxu0 %v418
      %495 = vmatpush.bf16.msra.mxu0 %v416
      %496 = vmatpush.bf16.msra.mxu0 %v414
      %497 = vmatpush.bf16.msra.mxu0 %v412
      %498 = vmatmul.bf16.gmra.mxu0 %v325
      %v499 = vpop.f32.mrf.mxu0
      %v500 = vadd.f32 0.0, %v499
      %v501 = vpop.f32.mrf.mxu0
      %v502 = vadd.f32 0.0, %v501
      %503 = vdwg.mxu0
      %504 = vmatpush.bf16.msra.mxu0 0
      %505 = vmatpush.bf16.msra.mxu0 0
      %506 = vmatpush.bf16.msra.mxu0 0
      %507 = vmatpush.bf16.msra.mxu0 0
      %508 = vmatpush.bf16.msra.mxu0 %v434
      %509 = vmatpush.bf16.msra.mxu0 %v432
      %510 = vmatpush.bf16.msra.mxu0 %v430
      %511 = vmatpush.bf16.msra.mxu0 %v428
      %512 = vmatmul.bf16.gmra.mxu0 %v460
      %v513 = vpop.f32.mrf.mxu0
      %v514 = vadd.f32 %v500, %v513
      %v515 = vpop.f32.mrf.mxu0
      %v516 = vadd.f32 %v502, %v515
      %517 = vdwg.mxu0
      %v518 = vld [vmem:[%s1 + $0xc] sm:$0xf]
      %v519 = vld [vmem:[%s1 + $0x1c] sm:$0xf]
      %v520 = vld [vmem:[%s1 + $0x2c] sm:$0xf]
      %v521 = vld [vmem:[%s1 + $0x3c] sm:$0xf]
      %v522 = vld [vmem:[%s1 + $0x4c] sm:$0xf]
      %v523 = vld [vmem:[%s1 + $0x5c] sm:$0xf]
      %v524 = vld [vmem:[%s1 + $0x6c] sm:$0xf]
      %v525 = vld [vmem:[%s1 + $0x7c] sm:$0xf]
      %v526 = vld [vmem:[%s1 + $0x8c] sm:$0xf]
      %v527 = vld [vmem:[%s1 + $0x9c] sm:$0xf]
      %v528 = vld [vmem:[%s1 + $0xac] sm:$0xf]
      %v529 = vld [vmem:[%s1 + $0xbc] sm:$0xf]
      %v530 = vld [vmem:[%s1 + $0xcc] sm:$0xf]
      %v531 = vld [vmem:[%s1 + $0xdc] sm:$0xf]
      %v532 = vld [vmem:[%s1 + $0xec] sm:$0xf]
      %v533 = vld [vmem:[%s1 + $0xfc] sm:$0xf]
      %v534 = vld [vmem:[%s1 + $0x10c] sm:$0xf]
      %v535 = vld [vmem:[%s1 + $0x11c] sm:$0xf]
      %v536 = vld [vmem:[%s1 + $0x12c] sm:$0xf]
      %v537 = vld [vmem:[%s1 + $0x13c] sm:$0xf]
      %v538 = vld [vmem:[%s1 + $0x14c] sm:$0xf]
      %v539 = vld [vmem:[%s1 + $0x15c] sm:$0xf]
      %v540 = vld [vmem:[%s1 + $0x16c] sm:$0xf]
      %v541 = vld [vmem:[%s1 + $0x17c] sm:$0xf]
      %vm546 = vcmask 1046528
      %v547 = vrot.slane %v261, 1
      %v548 = vrot.slane %v263, 1
      %v549 = vsel %vm546, %v547, %v548
      %v550 = vrot.slane %v262, 1
      %v551 = vrot.slane %v264, 1
      %v552 = vsel %vm546, %v550, %v551
      %v578 = vunpack.c.l.b16 %v518
      %v579 = vunpack.c.l.b16 %v519
      %v580 = vunpack.c.l.b16 %v520
      %v581 = vunpack.c.l.b16 %v521
      %v582 = vunpack.c.l.b16 %v522
      %v583 = vunpack.c.l.b16 %v523
      %v584 = vunpack.c.l.b16 %v524
      %v585 = vunpack.c.l.b16 %v525
      %v586 = vunpack.c.l.b16 %v526
      %v587 = vunpack.c.l.b16 %v527
      %v588 = vunpack.c.l.b16 %v528
      %v589 = vunpack.c.l.b16 %v529
      %v590 = vunpack.c.l.b16 %v530
      %v591 = vunpack.c.l.b16 %v531
      %v592 = vunpack.c.l.b16 %v532
      %v593 = vunpack.c.l.b16 %v533
      %v594 = vunpack.c.l.b16 %v534
      %v595 = vunpack.c.l.b16 %v535
      %v596 = vunpack.c.l.b16 %v536
      %v597 = vunpack.c.l.b16 %v537
      %v598 = vunpack.c.l.b16 %v538
      %v599 = vunpack.c.l.b16 %v539
      %v600 = vunpack.c.l.b16 %v540
      %v601 = vunpack.c.l.b16 %v541
      %v602 = vpack.c.b16 %v579, %v578
      %v603 = vpack.c.b16 %v581, %v580
      %v604 = vpack.c.b16 %v583, %v582
      %v605 = vpack.c.b16 %v585, %v584
      %v606 = vpack.c.b16 %v587, %v586
      %v607 = vpack.c.b16 %v589, %v588
      %v608 = vpack.c.b16 %v591, %v590
      %v609 = vpack.c.b16 %v593, %v592
      %v610 = vpack.c.b16 %v595, %v594
      %v611 = vpack.c.b16 %v597, %v596
      %v612 = vpack.c.b16 %v599, %v598
      %v613 = vpack.c.b16 %v601, %v600
      %v627 = vsel %vm233, %v552, 0
      %629 = vmatpush.bf16.msra.mxu0 %v609
      %630 = vmatpush.bf16.msra.mxu0 %v608
      %631 = vmatpush.bf16.msra.mxu0 %v607
      %632 = vmatpush.bf16.msra.mxu0 %v606
      %633 = vmatpush.bf16.msra.mxu0 %v605
      %634 = vmatpush.bf16.msra.mxu0 %v604
      %635 = vmatpush.bf16.msra.mxu0 %v603
      %636 = vmatpush.bf16.msra.mxu0 %v602
      %637 = vmatmul.bf16.gmra.mxu0 %v549
      %v638 = vpop.f32.mrf.mxu0
      %v639 = vadd.f32 0.0, %v638
      %v640 = vpop.f32.mrf.mxu0
      %v641 = vadd.f32 0.0, %v640
      %642 = vdwg.mxu0
      %643 = vmatpush.bf16.msra.mxu0 0
      %644 = vmatpush.bf16.msra.mxu0 0
      %645 = vmatpush.bf16.msra.mxu0 0
      %646 = vmatpush.bf16.msra.mxu0 0
      %647 = vmatpush.bf16.msra.mxu0 %v613
      %648 = vmatpush.bf16.msra.mxu0 %v612
      %649 = vmatpush.bf16.msra.mxu0 %v611
      %650 = vmatpush.bf16.msra.mxu0 %v610
      %651 = vmatmul.bf16.gmra.mxu0 %v627
      %v652 = vpop.f32.mrf.mxu0
      %v653 = vadd.f32 %v639, %v652
      %v654 = vpop.f32.mrf.mxu0
      %v655 = vadd.f32 %v641, %v654
      %656 = vdwg.mxu0
      %v681 = vunpack.c.l.b16 %v265
      %v682 = vunpack.c.l.b16 %v266
      %v683 = vunpack.c.l.b16 %v267
      %v684 = vunpack.c.l.b16 %v268
      %v685 = vunpack.c.l.b16 %v269
      %v686 = vunpack.c.l.b16 %v270
      %v687 = vunpack.c.l.b16 %v271
      %v688 = vunpack.c.l.b16 %v272
      %v689 = vunpack.c.l.b16 %v273
      %v690 = vunpack.c.l.b16 %v274
      %v691 = vunpack.c.l.b16 %v275
      %v692 = vunpack.c.l.b16 %v276
      %v693 = vunpack.c.l.b16 %v277
      %v694 = vunpack.c.l.b16 %v278
      %v695 = vunpack.c.l.b16 %v279
      %v696 = vunpack.c.l.b16 %v280
      %v697 = vunpack.c.l.b16 %v281
      %v698 = vunpack.c.l.b16 %v282
      %v699 = vunpack.c.l.b16 %v283
      %v700 = vunpack.c.l.b16 %v284
      %v701 = vunpack.c.l.b16 %v285
      %v702 = vunpack.c.l.b16 %v286
      %v703 = vunpack.c.l.b16 %v287
      %v704 = vunpack.c.l.b16 %v288
      %v705 = vpack.c.b16 %v682, %v681
      %v706 = vpack.c.b16 %v684, %v683
      %v707 = vpack.c.b16 %v686, %v685
      %v708 = vpack.c.b16 %v688, %v687
      %v709 = vpack.c.b16 %v690, %v689
      %v710 = vpack.c.b16 %v692, %v691
      %v711 = vpack.c.b16 %v694, %v693
      %v712 = vpack.c.b16 %v696, %v695
      %v713 = vpack.c.b16 %v698, %v697
      %v714 = vpack.c.b16 %v700, %v699
      %v715 = vpack.c.b16 %v702, %v701
      %v716 = vpack.c.b16 %v704, %v703
      %v730 = vsel %vm233, %v248, 0
      %732 = vmatpush.bf16.msra.mxu0 %v712
      %733 = vmatpush.bf16.msra.mxu0 %v711
      %734 = vmatpush.bf16.msra.mxu0 %v710
      %735 = vmatpush.bf16.msra.mxu0 %v709
      %736 = vmatpush.bf16.msra.mxu0 %v708
      %737 = vmatpush.bf16.msra.mxu0 %v707
      %738 = vmatpush.bf16.msra.mxu0 %v706
      %739 = vmatpush.bf16.msra.mxu0 %v705
      %740 = vmatmul.bf16.gmra.mxu0 %v247
      %v741 = vpop.f32.mrf.mxu0
      %v742 = vadd.f32 %v653, %v741
      %v743 = vpop.f32.mrf.mxu0
      %v744 = vadd.f32 %v655, %v743
      %745 = vdwg.mxu0
      %746 = vmatpush.bf16.msra.mxu0 0
      %747 = vmatpush.bf16.msra.mxu0 0
      %748 = vmatpush.bf16.msra.mxu0 0
      %749 = vmatpush.bf16.msra.mxu0 0
      %750 = vmatpush.bf16.msra.mxu0 %v716
      %751 = vmatpush.bf16.msra.mxu0 %v715
      %752 = vmatpush.bf16.msra.mxu0 %v714
      %753 = vmatpush.bf16.msra.mxu0 %v713
      %754 = vmatmul.bf16.gmra.mxu0 %v730
      %v755 = vpop.f32.mrf.mxu0
      %v756 = vadd.f32 %v742, %v755
      %v757 = vpop.f32.mrf.mxu0
      %v758 = vadd.f32 %v744, %v757
      %759 = vdwg.mxu0
      %v760 = vperm.slane %v241, 0
      %v761 = vadd.f32 %v514, %v760
      %v762 = vadd.f32 %v516, %v760
      %v763 = vadd.f32 %v756, %v486
      %v764 = vadd.f32 %v758, %v488
      %v765 = vperm.slane %v240, 0
      %v766 = vadd.f32 %v763, %v765
      %v767 = vadd.f32 %v764, %v765
      %v768 = vmax.f32 %v766, 0.0
      %v769 = vmax.f32 %v767, 0.0
      %770 = vst [vmem:[#allocation3 + $0x1] sm:$0xff] %v768
      %771 = vst [vmem:[#allocation3 + $0x9] sm:$0xff] %v769
      %v772 = vld [vmem:[#allocation3] sm:$0xff]
      %v773 = vld [vmem:[#allocation3 + $0x8] sm:$0xff]
      %v774 = vpack.c.bf16 %v773, %v772
      %v775 = vld [vmem:[%s2] sm:$0xf]
      %v776 = vld [vmem:[%s2 + $0x28] sm:$0xf]
      %v777 = vld [vmem:[%s2 + $0x50] sm:$0xf]
      %v778 = vld [vmem:[%s2 + $0x78] sm:$0xf]
      %v779 = vld [vmem:[%s2 + $0xa0] sm:$0xf]
      %v780 = vld [vmem:[%s2 + $0xc8] sm:$0xf]
      %v781 = vld [vmem:[%s2 + $0xf0] sm:$0xf]
      %v782 = vld [vmem:[%s2 + $0x118] sm:$0xf]
      %v783 = vld [vmem:[%s2 + $0x140] sm:$0xf]
      %v784 = vld [vmem:[%s2 + $0x168] sm:$0xf]
      %v785 = vld [vmem:[%s2 + $0x190] sm:$0xf]
      %v786 = vld [vmem:[%s2 + $0x1b8] sm:$0xf]
      %v787 = vld [vmem:[%s2 + $0x1e0] sm:$0xf]
      %v788 = vld [vmem:[%s2 + $0x208] sm:$0xf]
      %v789 = vld [vmem:[%s2 + $0x230] sm:$0xf]
      %v790 = vld [vmem:[%s2 + $0x258] sm:$0xf]
      %v791 = vld [vmem:[#allocation3 + $0x1] sm:$0xff]
      %v792 = vld [vmem:[#allocation3 + $0x9] sm:$0xff]
      %v793 = vpack.c.bf16 %v792, %v791
      %v794 = vld [vmem:[%s2 + $0x4] sm:$0xf]
      %v795 = vld [vmem:[%s2 + $0x2c] sm:$0xf]
      %v796 = vld [vmem:[%s2 + $0x54] sm:$0xf]
      %v797 = vld [vmem:[%s2 + $0x7c] sm:$0xf]
      %v798 = vld [vmem:[%s2 + $0xa4] sm:$0xf]
      %v799 = vld [vmem:[%s2 + $0xcc] sm:$0xf]
      %v800 = vld [vmem:[%s2 + $0xf4] sm:$0xf]
      %v801 = vld [vmem:[%s2 + $0x11c] sm:$0xf]
      %v802 = vld [vmem:[%s2 + $0x144] sm:$0xf]
      %v803 = vld [vmem:[%s2 + $0x16c] sm:$0xf]
      %v804 = vld [vmem:[%s2 + $0x194] sm:$0xf]
      %v805 = vld [vmem:[%s2 + $0x1bc] sm:$0xf]
      %v806 = vld [vmem:[%s2 + $0x1e4] sm:$0xf]
      %v807 = vld [vmem:[%s2 + $0x20c] sm:$0xf]
      %v808 = vld [vmem:[%s2 + $0x234] sm:$0xf]
      %v809 = vld [vmem:[%s2 + $0x25c] sm:$0xf]
      %v826 = vunpack.c.l.b16 %v794
      %v827 = vunpack.c.l.b16 %v795
      %v828 = vunpack.c.l.b16 %v796
      %v829 = vunpack.c.l.b16 %v797
      %v830 = vunpack.c.l.b16 %v798
      %v831 = vunpack.c.l.b16 %v799
      %v832 = vunpack.c.l.b16 %v800
      %v833 = vunpack.c.l.b16 %v801
      %v834 = vunpack.c.l.b16 %v802
      %v835 = vunpack.c.l.b16 %v803
      %v836 = vunpack.c.l.b16 %v804
      %v837 = vunpack.c.l.b16 %v805
      %v838 = vunpack.c.l.b16 %v806
      %v839 = vunpack.c.l.b16 %v807
      %v840 = vunpack.c.l.b16 %v808
      %v841 = vunpack.c.l.b16 %v809
      %v842 = vpack.c.b16 %v827, %v826
      %v843 = vpack.c.b16 %v829, %v828
      %v844 = vpack.c.b16 %v831, %v830
      %v845 = vpack.c.b16 %v833, %v832
      %v846 = vpack.c.b16 %v835, %v834
      %v847 = vpack.c.b16 %v837, %v836
      %v848 = vpack.c.b16 %v839, %v838
      %v849 = vpack.c.b16 %v841, %v840
      %858 = vmatpush.bf16.msra.mxu0 %v849
      %859 = vmatpush.bf16.msra.mxu0 %v848
      %860 = vmatpush.bf16.msra.mxu0 %v847
      %861 = vmatpush.bf16.msra.mxu0 %v846
      %862 = vmatpush.bf16.msra.mxu0 %v845
      %863 = vmatpush.bf16.msra.mxu0 %v844
      %864 = vmatpush.bf16.msra.mxu0 %v843
      %865 = vmatpush.bf16.msra.mxu0 %v842
      %866 = vmatmul.bf16.gmra.mxu0 %v793
      %v867 = vpop.f32.mrf.mxu0
      %v868 = vadd.f32 0.0, %v867
      %v869 = vpop.f32.mrf.mxu0
      %v870 = vadd.f32 0.0, %v869
      %871 = vdwg.mxu0
      %v888 = vunpack.c.l.b16 %v775
      %v889 = vunpack.c.l.b16 %v776
      %v890 = vunpack.c.l.b16 %v777
      %v891 = vunpack.c.l.b16 %v778
      %v892 = vunpack.c.l.b16 %v779
      %v893 = vunpack.c.l.b16 %v780
      %v894 = vunpack.c.l.b16 %v781
      %v895 = vunpack.c.l.b16 %v782
      %v896 = vunpack.c.l.b16 %v783
      %v897 = vunpack.c.l.b16 %v784
      %v898 = vunpack.c.l.b16 %v785
      %v899 = vunpack.c.l.b16 %v786
      %v900 = vunpack.c.l.b16 %v787
      %v901 = vunpack.c.l.b16 %v788
      %v902 = vunpack.c.l.b16 %v789
      %v903 = vunpack.c.l.b16 %v790
      %v904 = vpack.c.b16 %v889, %v888
      %v905 = vpack.c.b16 %v891, %v890
      %v906 = vpack.c.b16 %v893, %v892
      %v907 = vpack.c.b16 %v895, %v894
      %v908 = vpack.c.b16 %v897, %v896
      %v909 = vpack.c.b16 %v899, %v898
      %v910 = vpack.c.b16 %v901, %v900
      %v911 = vpack.c.b16 %v903, %v902
      %920 = vmatpush.bf16.msra.mxu0 %v911
      %921 = vmatpush.bf16.msra.mxu0 %v910
      %922 = vmatpush.bf16.msra.mxu0 %v909
      %923 = vmatpush.bf16.msra.mxu0 %v908
      %924 = vmatpush.bf16.msra.mxu0 %v907
      %925 = vmatpush.bf16.msra.mxu0 %v906
      %926 = vmatpush.bf16.msra.mxu0 %v905
      %927 = vmatpush.bf16.msra.mxu0 %v904
      %928 = vmatmul.bf16.gmra.mxu0 %v774
      %v929 = vpop.f32.mrf.mxu0
      %v930 = vadd.f32 %v868, %v929
      %v931 = vpop.f32.mrf.mxu0
      %v932 = vadd.f32 %v870, %v931
      %933 = vdwg.mxu0
      %v934 = vld [vmem:[#allocation3 + $0x2] sm:$0xff]
      %v935 = vld [vmem:[#allocation3 + $0xa] sm:$0xff]
      %v936 = vpack.c.bf16 %v935, %v934
      %v937 = vld [vmem:[%s2 + $0x8] sm:$0xf]
      %v938 = vld [vmem:[%s2 + $0x30] sm:$0xf]
      %v939 = vld [vmem:[%s2 + $0x58] sm:$0xf]
      %v940 = vld [vmem:[%s2 + $0x80] sm:$0xf]
      %v941 = vld [vmem:[%s2 + $0xa8] sm:$0xf]
      %v942 = vld [vmem:[%s2 + $0xd0] sm:$0xf]
      %v943 = vld [vmem:[%s2 + $0xf8] sm:$0xf]
      %v944 = vld [vmem:[%s2 + $0x120] sm:$0xf]
      %v945 = vld [vmem:[%s2 + $0x148] sm:$0xf]
      %v946 = vld [vmem:[%s2 + $0x170] sm:$0xf]
      %v947 = vld [vmem:[%s2 + $0x198] sm:$0xf]
      %v948 = vld [vmem:[%s2 + $0x1c0] sm:$0xf]
      %v949 = vld [vmem:[%s2 + $0x1e8] sm:$0xf]
      %v950 = vld [vmem:[%s2 + $0x210] sm:$0xf]
      %v951 = vld [vmem:[%s2 + $0x238] sm:$0xf]
      %v952 = vld [vmem:[%s2 + $0x260] sm:$0xf]
      %v969 = vunpack.c.l.b16 %v937
      %v970 = vunpack.c.l.b16 %v938
      %v971 = vunpack.c.l.b16 %v939
      %v972 = vunpack.c.l.b16 %v940
      %v973 = vunpack.c.l.b16 %v941
      %v974 = vunpack.c.l.b16 %v942
      %v975 = vunpack.c.l.b16 %v943
      %v976 = vunpack.c.l.b16 %v944
      %v977 = vunpack.c.l.b16 %v945
      %v978 = vunpack.c.l.b16 %v946
      %v979 = vunpack.c.l.b16 %v947
      %v980 = vunpack.c.l.b16 %v948
      %v981 = vunpack.c.l.b16 %v949
      %v982 = vunpack.c.l.b16 %v950
      %v983 = vunpack.c.l.b16 %v951
      %v984 = vunpack.c.l.b16 %v952
      %v985 = vpack.c.b16 %v970, %v969
      %v986 = vpack.c.b16 %v972, %v971
      %v987 = vpack.c.b16 %v974, %v973
      %v988 = vpack.c.b16 %v976, %v975
      %v989 = vpack.c.b16 %v978, %v977
      %v990 = vpack.c.b16 %v980, %v979
      %v991 = vpack.c.b16 %v982, %v981
      %v992 = vpack.c.b16 %v984, %v983
      %1001 = vmatpush.bf16.msra.mxu0 %v992
      %1002 = vmatpush.bf16.msra.mxu0 %v991
      %1003 = vmatpush.bf16.msra.mxu0 %v990
      %1004 = vmatpush.bf16.msra.mxu0 %v989
      %1005 = vmatpush.bf16.msra.mxu0 %v988
      %1006 = vmatpush.bf16.msra.mxu0 %v987
      %1007 = vmatpush.bf16.msra.mxu0 %v986
      %1008 = vmatpush.bf16.msra.mxu0 %v985
      %1009 = vmatmul.bf16.gmra.mxu0 %v936
      %v1010 = vpop.f32.mrf.mxu0
      %v1011 = vadd.f32 0.0, %v1010
      %v1012 = vpop.f32.mrf.mxu0
      %v1013 = vadd.f32 0.0, %v1012
      %1014 = vdwg.mxu0
      %v1015 = vadd.f32 %v930, %v1011
      %v1016 = vadd.f32 %v932, %v1013
      %v1017 = vperm.slane %v242, 0
      %v1018 = vadd.f32 %v1015, %v1017
      %v1019 = vadd.f32 %v1016, %v1017
      %v1020 = vadd.f32 %v1018, %v761
      %v1021 = vadd.f32 %v1019, %v762
      %v1022 = vmax.f32 %v1020, 0.0
      %v1023 = vmax.f32 %v1021, 0.0
      %1024 = vst [vmem:[#allocation3 + $0x1] sm:$0xff] %v1022
      %1025 = vst [vmem:[#allocation3 + $0x9] sm:$0xff] %v1023
      %v1026 = vld [vmem:[%s3 + $0x3] sm:$0x1]
      %v1027 = vld [vmem:[%s3 + $0x4] sm:$0x1]
      %v1028 = vld [vmem:[%s3 + $0x5] sm:$0x1]
      %v1029 = vld [vmem:[#allocation3] sm:$0xff]
      %v1030 = vld [vmem:[#allocation3 + $0x8] sm:$0xff]
      %v1031 = vpack.c.bf16 %v1030, %v1029
      %v1032 = vld [vmem:[#allocation3 + $0x1] sm:$0xff]
      %v1033 = vld [vmem:[#allocation3 + $0x9] sm:$0xff]
      %v1034 = vpack.c.bf16 %v1033, %v1032
      %v1035 = vld [vmem:[#allocation3 + $0x2] sm:$0xff]
      %v1036 = vld [vmem:[#allocation3 + $0xa] sm:$0xff]
      %v1037 = vpack.c.bf16 %v1036, %v1035
      %v1038 = vld [vmem:[%s2 + $0xc] sm:$0xf]
      %v1039 = vld [vmem:[%s2 + $0x34] sm:$0xf]
      %v1040 = vld [vmem:[%s2 + $0x5c] sm:$0xf]
      %v1041 = vld [vmem:[%s2 + $0x84] sm:$0xf]
      %v1042 = vld [vmem:[%s2 + $0xac] sm:$0xf]
      %v1043 = vld [vmem:[%s2 + $0xd4] sm:$0xf]
      %v1044 = vld [vmem:[%s2 + $0xfc] sm:$0xf]
      %v1045 = vld [vmem:[%s2 + $0x124] sm:$0xf]
      %v1046 = vld [vmem:[%s2 + $0x14c] sm:$0xf]
      %v1047 = vld [vmem:[%s2 + $0x174] sm:$0xf]
      %v1048 = vld [vmem:[%s2 + $0x19c] sm:$0xf]
      %v1049 = vld [vmem:[%s2 + $0x1c4] sm:$0xf]
      %v1050 = vld [vmem:[%s2 + $0x1ec] sm:$0xf]
      %v1051 = vld [vmem:[%s2 + $0x214] sm:$0xf]
      %v1052 = vld [vmem:[%s2 + $0x23c] sm:$0xf]
      %v1053 = vld [vmem:[%s2 + $0x264] sm:$0xf]
      %v1054 = vld [vmem:[%s2 + $0x10] sm:$0xff]
      %v1055 = vld [vmem:[%s2 + $0x38] sm:$0xff]
      %v1056 = vld [vmem:[%s2 + $0x60] sm:$0xff]
      %v1057 = vld [vmem:[%s2 + $0x88] sm:$0xff]
      %v1058 = vld [vmem:[%s2 + $0xb0] sm:$0xff]
      %v1059 = vld [vmem:[%s2 + $0xd8] sm:$0xff]
      %v1060 = vld [vmem:[%s2 + $0x100] sm:$0xff]
      %v1061 = vld [vmem:[%s2 + $0x128] sm:$0xff]
      %v1062 = vld [vmem:[%s2 + $0x150] sm:$0xff]
      %v1063 = vld [vmem:[%s2 + $0x178] sm:$0xff]
      %v1064 = vld [vmem:[%s2 + $0x1a0] sm:$0xff]
      %v1065 = vld [vmem:[%s2 + $0x1c8] sm:$0xff]
      %v1066 = vld [vmem:[%s2 + $0x1f0] sm:$0xff]
      %v1067 = vld [vmem:[%s2 + $0x218] sm:$0xff]
      %v1068 = vld [vmem:[%s2 + $0x240] sm:$0xff]
      %v1069 = vld [vmem:[%s2 + $0x268] sm:$0xff]
      %v1086 = vunpack.c.l.b16 %v1054
      %v1087 = vunpack.c.h.b16 %v1054
      %v1088 = vunpack.c.l.b16 %v1055
      %v1089 = vunpack.c.h.b16 %v1055
      %v1090 = vunpack.c.l.b16 %v1056
      %v1091 = vunpack.c.h.b16 %v1056
      %v1092 = vunpack.c.l.b16 %v1057
      %v1093 = vunpack.c.h.b16 %v1057
      %v1094 = vunpack.c.l.b16 %v1058
      %v1095 = vunpack.c.h.b16 %v1058
      %v1096 = vunpack.c.l.b16 %v1059
      %v1097 = vunpack.c.h.b16 %v1059
      %v1098 = vunpack.c.l.b16 %v1060
      %v1099 = vunpack.c.h.b16 %v1060
      %v1100 = vunpack.c.l.b16 %v1061
      %v1101 = vunpack.c.h.b16 %v1061
      %v1102 = vunpack.c.l.b16 %v1062
      %v1103 = vunpack.c.h.b16 %v1062
      %v1104 = vunpack.c.l.b16 %v1063
      %v1105 = vunpack.c.h.b16 %v1063
      %v1106 = vunpack.c.l.b16 %v1064
      %v1107 = vunpack.c.h.b16 %v1064
      %v1108 = vunpack.c.l.b16 %v1065
      %v1109 = vunpack.c.h.b16 %v1065
      %v1110 = vunpack.c.l.b16 %v1066
      %v1111 = vunpack.c.h.b16 %v1066
      %v1112 = vunpack.c.l.b16 %v1067
      %v1113 = vunpack.c.h.b16 %v1067
      %v1114 = vunpack.c.l.b16 %v1068
      %v1115 = vunpack.c.h.b16 %v1068
      %v1116 = vunpack.c.l.b16 %v1069
      %v1117 = vunpack.c.h.b16 %v1069
      %v1118 = vpack.c.b16 %v1088, %v1086
      %v1119 = vpack.c.b16 %v1089, %v1087
      %v1120 = vpack.c.b16 %v1092, %v1090
      %v1121 = vpack.c.b16 %v1093, %v1091
      %v1122 = vpack.c.b16 %v1096, %v1094
      %v1123 = vpack.c.b16 %v1097, %v1095
      %v1124 = vpack.c.b16 %v1100, %v1098
      %v1125 = vpack.c.b16 %v1101, %v1099
      %v1126 = vpack.c.b16 %v1104, %v1102
      %v1127 = vpack.c.b16 %v1105, %v1103
      %v1128 = vpack.c.b16 %v1108, %v1106
      %v1129 = vpack.c.b16 %v1109, %v1107
      %v1130 = vpack.c.b16 %v1112, %v1110
      %v1131 = vpack.c.b16 %v1113, %v1111
      %v1132 = vpack.c.b16 %v1116, %v1114
      %v1133 = vpack.c.b16 %v1117, %v1115
      %1150 = vmatpush.bf16.msra.mxu0 %v1132
      %1151 = vmatpush.bf16.msra.mxu0 %v1130
      %1152 = vmatpush.bf16.msra.mxu0 %v1128
      %1153 = vmatpush.bf16.msra.mxu0 %v1126
      %1154 = vmatpush.bf16.msra.mxu0 %v1124
      %1155 = vmatpush.bf16.msra.mxu0 %v1122
      %1156 = vmatpush.bf16.msra.mxu0 %v1120
      %1157 = vmatpush.bf16.msra.mxu0 %v1118
      %1158 = vmatmul.bf16.gmra.mxu0 %v1034
      %v1159 = vpop.f32.mrf.mxu0
      %v1160 = vadd.f32 0.0, %v1159
      %v1161 = vpop.f32.mrf.mxu0
      %v1162 = vadd.f32 0.0, %v1161
      %1163 = vdwg.mxu0
      %1164 = vmatpush.bf16.msra.mxu0 %v1133
      %1165 = vmatpush.bf16.msra.mxu0 %v1131
      %1166 = vmatpush.bf16.msra.mxu0 %v1129
      %1167 = vmatpush.bf16.msra.mxu0 %v1127
      %1168 = vmatpush.bf16.msra.mxu0 %v1125
      %1169 = vmatpush.bf16.msra.mxu0 %v1123
      %1170 = vmatpush.bf16.msra.mxu0 %v1121
      %1171 = vmatpush.bf16.msra.mxu0 %v1119
      %1172 = vmatmul.bf16.gmra.mxu0 %v1034
      %v1173 = vpop.f32.mrf.mxu0
      %v1174 = vadd.f32 0.0, %v1173
      %v1175 = vpop.f32.mrf.mxu0
      %v1176 = vadd.f32 0.0, %v1175
      %1177 = vdwg.mxu0
      %v1178 = vld [vmem:[%s2 + $0x18] sm:$0xf]
      %v1179 = vld [vmem:[%s2 + $0x40] sm:$0xf]
      %v1180 = vld [vmem:[%s2 + $0x68] sm:$0xf]
      %v1181 = vld [vmem:[%s2 + $0x90] sm:$0xf]
      %v1182 = vld [vmem:[%s2 + $0xb8] sm:$0xf]
      %v1183 = vld [vmem:[%s2 + $0xe0] sm:$0xf]
      %v1184 = vld [vmem:[%s2 + $0x108] sm:$0xf]
      %v1185 = vld [vmem:[%s2 + $0x130] sm:$0xf]
      %v1186 = vld [vmem:[%s2 + $0x158] sm:$0xf]
      %v1187 = vld [vmem:[%s2 + $0x180] sm:$0xf]
      %v1188 = vld [vmem:[%s2 + $0x1a8] sm:$0xf]
      %v1189 = vld [vmem:[%s2 + $0x1d0] sm:$0xf]
      %v1190 = vld [vmem:[%s2 + $0x1f8] sm:$0xf]
      %v1191 = vld [vmem:[%s2 + $0x220] sm:$0xf]
      %v1192 = vld [vmem:[%s2 + $0x248] sm:$0xf]
      %v1193 = vld [vmem:[%s2 + $0x270] sm:$0xf]
      %v1210 = vunpack.c.l.b16 %v1178
      %v1211 = vunpack.c.l.b16 %v1179
      %v1212 = vunpack.c.l.b16 %v1180
      %v1213 = vunpack.c.l.b16 %v1181
      %v1214 = vunpack.c.l.b16 %v1182
      %v1215 = vunpack.c.l.b16 %v1183
      %v1216 = vunpack.c.l.b16 %v1184
      %v1217 = vunpack.c.l.b16 %v1185
      %v1218 = vunpack.c.l.b16 %v1186
      %v1219 = vunpack.c.l.b16 %v1187
      %v1220 = vunpack.c.l.b16 %v1188
      %v1221 = vunpack.c.l.b16 %v1189
      %v1222 = vunpack.c.l.b16 %v1190
      %v1223 = vunpack.c.l.b16 %v1191
      %v1224 = vunpack.c.l.b16 %v1192
      %v1225 = vunpack.c.l.b16 %v1193
      %v1226 = vpack.c.b16 %v1211, %v1210
      %v1227 = vpack.c.b16 %v1213, %v1212
      %v1228 = vpack.c.b16 %v1215, %v1214
      %v1229 = vpack.c.b16 %v1217, %v1216
      %v1230 = vpack.c.b16 %v1219, %v1218
      %v1231 = vpack.c.b16 %v1221, %v1220
      %v1232 = vpack.c.b16 %v1223, %v1222
      %v1233 = vpack.c.b16 %v1225, %v1224
      %1242 = vmatpush.bf16.msra.mxu0 %v1233
      %1243 = vmatpush.bf16.msra.mxu0 %v1232
      %1244 = vmatpush.bf16.msra.mxu0 %v1231
      %1245 = vmatpush.bf16.msra.mxu0 %v1230
      %1246 = vmatpush.bf16.msra.mxu0 %v1229
      %1247 = vmatpush.bf16.msra.mxu0 %v1228
      %1248 = vmatpush.bf16.msra.mxu0 %v1227
      %1249 = vmatpush.bf16.msra.mxu0 %v1226
      %1250 = vmatmul.bf16.gmra.mxu0 %v1037
      %v1251 = vpop.f32.mrf.mxu0
      %v1252 = vadd.f32 0.0, %v1251
      %v1253 = vpop.f32.mrf.mxu0
      %v1254 = vadd.f32 0.0, %v1253
      %1255 = vdwg.mxu0
      %v1272 = vunpack.c.l.b16 %v1038
      %v1273 = vunpack.c.l.b16 %v1039
      %v1274 = vunpack.c.l.b16 %v1040
      %v1275 = vunpack.c.l.b16 %v1041
      %v1276 = vunpack.c.l.b16 %v1042
      %v1277 = vunpack.c.l.b16 %v1043
      %v1278 = vunpack.c.l.b16 %v1044
      %v1279 = vunpack.c.l.b16 %v1045
      %v1280 = vunpack.c.l.b16 %v1046
      %v1281 = vunpack.c.l.b16 %v1047
      %v1282 = vunpack.c.l.b16 %v1048
      %v1283 = vunpack.c.l.b16 %v1049
      %v1284 = vunpack.c.l.b16 %v1050
      %v1285 = vunpack.c.l.b16 %v1051
      %v1286 = vunpack.c.l.b16 %v1052
      %v1287 = vunpack.c.l.b16 %v1053
      %v1288 = vpack.c.b16 %v1273, %v1272
      %v1289 = vpack.c.b16 %v1275, %v1274
      %v1290 = vpack.c.b16 %v1277, %v1276
      %v1291 = vpack.c.b16 %v1279, %v1278
      %v1292 = vpack.c.b16 %v1281, %v1280
      %v1293 = vpack.c.b16 %v1283, %v1282
      %v1294 = vpack.c.b16 %v1285, %v1284
      %v1295 = vpack.c.b16 %v1287, %v1286
      %1304 = vmatpush.bf16.msra.mxu0 %v1295
      %1305 = vmatpush.bf16.msra.mxu0 %v1294
      %1306 = vmatpush.bf16.msra.mxu0 %v1293
      %1307 = vmatpush.bf16.msra.mxu0 %v1292
      %1308 = vmatpush.bf16.msra.mxu0 %v1291
      %1309 = vmatpush.bf16.msra.mxu0 %v1290
      %1310 = vmatpush.bf16.msra.mxu0 %v1289
      %1311 = vmatpush.bf16.msra.mxu0 %v1288
      %1312 = vmatmul.bf16.gmra.mxu0 %v1031
      %v1313 = vpop.f32.mrf.mxu0
      %v1314 = vadd.f32 %v1252, %v1313
      %v1315 = vpop.f32.mrf.mxu0
      %v1316 = vadd.f32 %v1254, %v1315
      %1317 = vdwg.mxu0
      %v1318 = vperm.slane %v1027, 0
      %v1319 = vadd.f32 %v1174, %v1318
      %v1320 = vadd.f32 %v1176, %v1318
      %v1321 = vadd.f32 %v1314, %v1160
      %v1322 = vadd.f32 %v1316, %v1162
      %v1323 = vperm.slane %v1026, 0
      %v1324 = vadd.f32 %v1321, %v1323
      %v1325 = vadd.f32 %v1322, %v1323
      %v1326 = vmax.f32 %v1324, 0.0
      %v1327 = vmax.f32 %v1325, 0.0
      %1328 = vst [vmem:[#allocation3 + $0x1] sm:$0xff] %v1326
      %1329 = vst [vmem:[#allocation3 + $0x9] sm:$0xff] %v1327
      %v1330 = vld [vmem:[#allocation3] sm:$0xff]
      %v1331 = vld [vmem:[#allocation3 + $0x8] sm:$0xff]
      %v1332 = vpack.c.bf16 %v1331, %v1330
      %v1333 = vld [vmem:[%s2 + $0x1c] sm:$0xf]
      %v1334 = vld [vmem:[%s2 + $0x44] sm:$0xf]
      %v1335 = vld [vmem:[%s2 + $0x6c] sm:$0xf]
      %v1336 = vld [vmem:[%s2 + $0x94] sm:$0xf]
      %v1337 = vld [vmem:[%s2 + $0xbc] sm:$0xf]
      %v1338 = vld [vmem:[%s2 + $0xe4] sm:$0xf]
      %v1339 = vld [vmem:[%s2 + $0x10c] sm:$0xf]
      %v1340 = vld [vmem:[%s2 + $0x134] sm:$0xf]
      %v1341 = vld [vmem:[%s2 + $0x15c] sm:$0xf]
      %v1342 = vld [vmem:[%s2 + $0x184] sm:$0xf]
      %v1343 = vld [vmem:[%s2 + $0x1ac] sm:$0xf]
      %v1344 = vld [vmem:[%s2 + $0x1d4] sm:$0xf]
      %v1345 = vld [vmem:[%s2 + $0x1fc] sm:$0xf]
      %v1346 = vld [vmem:[%s2 + $0x224] sm:$0xf]
      %v1347 = vld [vmem:[%s2 + $0x24c] sm:$0xf]
      %v1348 = vld [vmem:[%s2 + $0x274] sm:$0xf]
      %v1349 = vld [vmem:[#allocation3 + $0x1] sm:$0xff]
      %v1350 = vld [vmem:[#allocation3 + $0x9] sm:$0xff]
      %v1351 = vpack.c.bf16 %v1350, %v1349
      %v1352 = vld [vmem:[%s2 + $0x20] sm:$0xf]
      %v1353 = vld [vmem:[%s2 + $0x48] sm:$0xf]
      %v1354 = vld [vmem:[%s2 + $0x70] sm:$0xf]
      %v1355 = vld [vmem:[%s2 + $0x98] sm:$0xf]
      %v1356 = vld [vmem:[%s2 + $0xc0] sm:$0xf]
      %v1357 = vld [vmem:[%s2 + $0xe8] sm:$0xf]
      %v1358 = vld [vmem:[%s2 + $0x110] sm:$0xf]
      %v1359 = vld [vmem:[%s2 + $0x138] sm:$0xf]
      %v1360 = vld [vmem:[%s2 + $0x160] sm:$0xf]
      %v1361 = vld [vmem:[%s2 + $0x188] sm:$0xf]
      %v1362 = vld [vmem:[%s2 + $0x1b0] sm:$0xf]
      %v1363 = vld [vmem:[%s2 + $0x1d8] sm:$0xf]
      %v1364 = vld [vmem:[%s2 + $0x200] sm:$0xf]
      %v1365 = vld [vmem:[%s2 + $0x228] sm:$0xf]
      %v1366 = vld [vmem:[%s2 + $0x250] sm:$0xf]
      %v1367 = vld [vmem:[%s2 + $0x278] sm:$0xf]
      %v1384 = vunpack.c.l.b16 %v1352
      %v1385 = vunpack.c.l.b16 %v1353
      %v1386 = vunpack.c.l.b16 %v1354
      %v1387 = vunpack.c.l.b16 %v1355
      %v1388 = vunpack.c.l.b16 %v1356
      %v1389 = vunpack.c.l.b16 %v1357
      %v1390 = vunpack.c.l.b16 %v1358
      %v1391 = vunpack.c.l.b16 %v1359
      %v1392 = vunpack.c.l.b16 %v1360
      %v1393 = vunpack.c.l.b16 %v1361
      %v1394 = vunpack.c.l.b16 %v1362
      %v1395 = vunpack.c.l.b16 %v1363
      %v1396 = vunpack.c.l.b16 %v1364
      %v1397 = vunpack.c.l.b16 %v1365
      %v1398 = vunpack.c.l.b16 %v1366
      %v1399 = vunpack.c.l.b16 %v1367
      %v1400 = vpack.c.b16 %v1385, %v1384
      %v1401 = vpack.c.b16 %v1387, %v1386
      %v1402 = vpack.c.b16 %v1389, %v1388
      %v1403 = vpack.c.b16 %v1391, %v1390
      %v1404 = vpack.c.b16 %v1393, %v1392
      %v1405 = vpack.c.b16 %v1395, %v1394
      %v1406 = vpack.c.b16 %v1397, %v1396
      %v1407 = vpack.c.b16 %v1399, %v1398
      %1416 = vmatpush.bf16.msra.mxu0 %v1407
      %1417 = vmatpush.bf16.msra.mxu0 %v1406
      %1418 = vmatpush.bf16.msra.mxu0 %v1405
      %1419 = vmatpush.bf16.msra.mxu0 %v1404
      %1420 = vmatpush.bf16.msra.mxu0 %v1403
      %1421 = vmatpush.bf16.msra.mxu0 %v1402
      %1422 = vmatpush.bf16.msra.mxu0 %v1401
      %1423 = vmatpush.bf16.msra.mxu0 %v1400
      %1424 = vmatmul.bf16.gmra.mxu0 %v1351
      %v1425 = vpop.f32.mrf.mxu0
      %v1426 = vadd.f32 0.0, %v1425
      %v1427 = vpop.f32.mrf.mxu0
      %v1428 = vadd.f32 0.0, %v1427
      %1429 = vdwg.mxu0
      %v1446 = vunpack.c.l.b16 %v1333
      %v1447 = vunpack.c.l.b16 %v1334
      %v1448 = vunpack.c.l.b16 %v1335
      %v1449 = vunpack.c.l.b16 %v1336
      %v1450 = vunpack.c.l.b16 %v1337
      %v1451 = vunpack.c.l.b16 %v1338
      %v1452 = vunpack.c.l.b16 %v1339
      %v1453 = vunpack.c.l.b16 %v1340
      %v1454 = vunpack.c.l.b16 %v1341
      %v1455 = vunpack.c.l.b16 %v1342
      %v1456 = vunpack.c.l.b16 %v1343
      %v1457 = vunpack.c.l.b16 %v1344
      %v1458 = vunpack.c.l.b16 %v1345
      %v1459 = vunpack.c.l.b16 %v1346
      %v1460 = vunpack.c.l.b16 %v1347
      %v1461 = vunpack.c.l.b16 %v1348
      %v1462 = vpack.c.b16 %v1447, %v1446
      %v1463 = vpack.c.b16 %v1449, %v1448
      %v1464 = vpack.c.b16 %v1451, %v1450
      %v1465 = vpack.c.b16 %v1453, %v1452
      %v1466 = vpack.c.b16 %v1455, %v1454
      %v1467 = vpack.c.b16 %v1457, %v1456
      %v1468 = vpack.c.b16 %v1459, %v1458
      %v1469 = vpack.c.b16 %v1461, %v1460
      %1478 = vmatpush.bf16.msra.mxu0 %v1469
      %1479 = vmatpush.bf16.msra.mxu0 %v1468
      %1480 = vmatpush.bf16.msra.mxu0 %v1467
      %1481 = vmatpush.bf16.msra.mxu0 %v1466
      %1482 = vmatpush.bf16.msra.mxu0 %v1465
      %1483 = vmatpush.bf16.msra.mxu0 %v1464
      %1484 = vmatpush.bf16.msra.mxu0 %v1463
      %1485 = vmatpush.bf16.msra.mxu0 %v1462
      %1486 = vmatmul.bf16.gmra.mxu0 %v1332
      %v1487 = vpop.f32.mrf.mxu0
      %v1488 = vadd.f32 %v1426, %v1487
      %v1489 = vpop.f32.mrf.mxu0
      %v1490 = vadd.f32 %v1428, %v1489
      %1491 = vdwg.mxu0
      %v1492 = vld [vmem:[#allocation3 + $0x2] sm:$0xff]
      %v1493 = vld [vmem:[#allocation3 + $0xa] sm:$0xff]
      %v1494 = vpack.c.bf16 %v1493, %v1492
      %v1495 = vld [vmem:[%s2 + $0x24] sm:$0xf]
      %v1496 = vld [vmem:[%s2 + $0x4c] sm:$0xf]
      %v1497 = vld [vmem:[%s2 + $0x74] sm:$0xf]
      %v1498 = vld [vmem:[%s2 + $0x9c] sm:$0xf]
      %v1499 = vld [vmem:[%s2 + $0xc4] sm:$0xf]
      %v1500 = vld [vmem:[%s2 + $0xec] sm:$0xf]
      %v1501 = vld [vmem:[%s2 + $0x114] sm:$0xf]
      %v1502 = vld [vmem:[%s2 + $0x13c] sm:$0xf]
      %v1503 = vld [vmem:[%s2 + $0x164] sm:$0xf]
      %v1504 = vld [vmem:[%s2 + $0x18c] sm:$0xf]
      %v1505 = vld [vmem:[%s2 + $0x1b4] sm:$0xf]
      %v1506 = vld [vmem:[%s2 + $0x1dc] sm:$0xf]
      %v1507 = vld [vmem:[%s2 + $0x204] sm:$0xf]
      %v1508 = vld [vmem:[%s2 + $0x22c] sm:$0xf]
      %v1509 = vld [vmem:[%s2 + $0x254] sm:$0xf]
      %v1510 = vld [vmem:[%s2 + $0x27c] sm:$0xf]
      %v1527 = vunpack.c.l.b16 %v1495
      %v1528 = vunpack.c.l.b16 %v1496
      %v1529 = vunpack.c.l.b16 %v1497
      %v1530 = vunpack.c.l.b16 %v1498
      %v1531 = vunpack.c.l.b16 %v1499
      %v1532 = vunpack.c.l.b16 %v1500
      %v1533 = vunpack.c.l.b16 %v1501
      %v1534 = vunpack.c.l.b16 %v1502
      %v1535 = vunpack.c.l.b16 %v1503
      %v1536 = vunpack.c.l.b16 %v1504
      %v1537 = vunpack.c.l.b16 %v1505
      %v1538 = vunpack.c.l.b16 %v1506
      %v1539 = vunpack.c.l.b16 %v1507
      %v1540 = vunpack.c.l.b16 %v1508
      %v1541 = vunpack.c.l.b16 %v1509
      %v1542 = vunpack.c.l.b16 %v1510
      %v1543 = vpack.c.b16 %v1528, %v1527
      %v1544 = vpack.c.b16 %v1530, %v1529
      %v1545 = vpack.c.b16 %v1532, %v1531
      %v1546 = vpack.c.b16 %v1534, %v1533
      %v1547 = vpack.c.b16 %v1536, %v1535
      %v1548 = vpack.c.b16 %v1538, %v1537
      %v1549 = vpack.c.b16 %v1540, %v1539
      %v1550 = vpack.c.b16 %v1542, %v1541
      %1559 = vmatpush.bf16.msra.mxu0 %v1550
      %1560 = vmatpush.bf16.msra.mxu0 %v1549
      %1561 = vmatpush.bf16.msra.mxu0 %v1548
      %1562 = vmatpush.bf16.msra.mxu0 %v1547
      %1563 = vmatpush.bf16.msra.mxu0 %v1546
      %1564 = vmatpush.bf16.msra.mxu0 %v1545
      %1565 = vmatpush.bf16.msra.mxu0 %v1544
      %1566 = vmatpush.bf16.msra.mxu0 %v1543
      %1567 = vmatmul.bf16.gmra.mxu0 %v1494
      %v1568 = vpop.f32.mrf.mxu0
      %v1569 = vadd.f32 0.0, %v1568
      %v1570 = vpop.f32.mrf.mxu0
      %v1571 = vadd.f32 0.0, %v1570
      %1572 = vdwg.mxu0
      %v1573 = vadd.f32 %v1488, %v1569
      %v1574 = vadd.f32 %v1490, %v1571
      %v1575 = vperm.slane %v1028, 0
      %v1576 = vadd.f32 %v1573, %v1575
      %v1577 = vadd.f32 %v1574, %v1575
      %v1578 = vadd.f32 %v1576, %v1319
      %v1579 = vadd.f32 %v1577, %v1320
      %v1580 = vmax.f32 %v1578, 0.0
      %v1581 = vmax.f32 %v1579, 0.0
      %1582 = vst [vmem:[%s197] sm:$0xff] %v1580
      %1583 = vst [vmem:[%s197 + $0x8] sm:$0xff] %v1581
      %p1584 = scmp.lt.s32.totalorder %s15, 1
      %s1585 = scalar_select %p1584, %s15, 1
      %s1586 = smul.addr %s1585, 2
      %s1587 = smul.addr %s1586, 8
      %s1588 = scalar_lea.vmem %s4, %s1587
      // Predicated region
      $region37: #{decoder_block.1} parent=35 // pred_check
        %p1589 = pneg %p122
      $region38: #{decoder_block.1} parent=35 // pred_check_branch
        %1591 = sbr.rel (%p1589) target = $region40
      $region39: #{decoder_block.1} parent=35 // pred_region
        _
      $region40: #{decoder_block.1} parent=35 // pred_fallthru
        _
    $region36: #{decoder_block.1} parent=5 // pred_fallthru
      _
    %p1592 = scmp.le.s32.totalorder 2, %s10
    // Predicated region
    $region41: #{decoder_block.1} parent=5 // pred_check
      %p1593 = pneg %p1592
    $region42: #{decoder_block.1} parent=5 // pred_check_branch
      %1595 = sbr.rel (%p1593) target = $region44
    $region43: #{decoder_block.1} parent=5 // pred_region
      %s1596 = ssub.s32 %s10, 2
      // Predicated region
      $region45: #{decoder_block.1} parent=43 // pred_check
        %p1597 = pneg %p128
      $region46: #{decoder_block.1} parent=43 // pred_check_branch
        %1599 = sbr.rel (%p1597) target = $region48
      $region47: #{decoder_block.1} parent=43 // pred_region
        %p1600 = scmp.lt.s32.totalorder %s16, 1
        %s1601 = scalar_select %p1600, %s16, 1
        %s1602 = smul.addr %s1601, 2
        %s1603 = smul.addr %s1602, 8
        %s1604 = scalar_lea.vmem %s4, %s1603
      $region48: #{decoder_block.1} parent=43 // pred_fallthru
        _
    $region44: #{decoder_block.1} parent=5 // pred_fallthru
      _
  $region6: #{decoder_block.1} parent=0 // loop_footer
    %s14 = sadd.s32 1, %s10
  $region7: #{decoder_block.1} parent=0 // loop_footer_branch
    %9 = sbr.rel target = $region3
  $region8: #{decoder_block.1} parent=0 // loop_exit
    _

</llo_original>
